<compile_context>
chip_gen: v7x
topology: tpu7x:2x2x1
jax: 0.10.0
libtpu: 0.0.40
codegen_flags: <defaults>
</compile_context>

<pallas_src>
import math

import jax
import jax.numpy as jnp
from jax.experimental import pallas as pl
from jax.experimental.pallas import tpu as pltpu


# Taylor coefficients for sin/cos on |theta| <= pi/4 (max error < 4e-7, below f32 out).
_SIN_C3 = -1.0 / 6.0
_SIN_C5 = 1.0 / 120.0
_SIN_C7 = -1.0 / 5040.0
_COS_C2 = -0.5
_COS_C4 = 1.0 / 24.0
_COS_C6 = -1.0 / 720.0
_COS_C8 = 1.0 / 40320.0


def _fourier_kernel(x_ref, bT_ref, out_ref):
    # x_ref:  (C, tile_s)   spatial tile of the (B, C, W*H) input
    # bT_ref: (M, C)        projection matrix (unscaled), resident across the grid
    # out_ref:(2M, tile_s)  final-layout tile: rows [:M] = sin, rows [M:] = cos
    m = bT_ref.shape[0]

    # t = B^T x on the MXU.  K = C is tiny, so the MXU slot has enormous slack and
    # HIGHEST (multi-pass f32) precision is effectively free; it is required because
    # the phase 2*pi*t can be O(100..1000) rad and bf16-pass error would be O(1).
    t = jnp.dot(
        bT_ref[...],
        x_ref[...].astype(jnp.float32),
        preferred_element_type=jnp.float32,
        precision=jax.lax.Precision.HIGHEST,
    )

    # Shared quarter-period range reduction for sin(2*pi*t) and cos(2*pi*t):
    #   q = round(4t), r = t - q/4  (|r| <= 1/8),  theta = 2*pi*r  (|theta| <= pi/4)
    #   2*pi*t = theta + (pi/2)*q  -> quadrant fix-up on k = q mod 4.
    q = jnp.round(4.0 * t)
    r = t - 0.25 * q
    theta = (2.0 * math.pi) * r
    z = theta * theta

    s0 = theta + theta * (z * (_SIN_C3 + z * (_SIN_C5 + z * _SIN_C7)))
    c0 = 1.0 + z * (_COS_C2 + z * (_COS_C4 + z * (_COS_C6 + z * _COS_C8)))

    qi = q.astype(jnp.int32)                 # two's complement -> & works for negatives
    swap = (qi & 1) != 0                     # odd quadrant: sin<->cos swap
    sin_neg = (qi & 2) != 0                  # quadrants 2,3: sin negative
    cos_neg = ((qi + 1) & 2) != 0            # quadrants 1,2: cos negative

    sin_base = jnp.where(swap, c0, s0)
    cos_base = jnp.where(swap, s0, c0)
    sin_v = jnp.where(sin_neg, -sin_base, sin_base)
    cos_v = jnp.where(cos_neg, -cos_base, cos_base)

    out_ref[:m, :] = sin_v.astype(out_ref.dtype)
    out_ref[m:, :] = cos_v.astype(out_ref.dtype)


def _vmem_capacity_bytes():
    try:
        return int(pltpu.get_tpu_info().vmem_capacity_bytes)
    except Exception:
        return 128 * 1024 * 1024  # assume 128 MiB-class part if query unavailable


def _choose_spatial_tile(wh, target):
    """Pick the spatial (lane) tile size.

    Prefers an exact divisor of W*H (no ragged block), but never shrinks below
    max(512, target//2) to find one -- small (128-lane) tiles cost ~3x in HBM
    efficiency.  Otherwise returns the target tile and lets Pallas mask the
    ragged last block.
    """
    if wh <= target:
        return wh                                   # single full-extent tile
    t = max(128, (target // 128) * 128)
    floor_div = max(512, t // 2)
    cand = t
    while cand >= floor_div:
        if wh % cand == 0:
            return cand
        cand -= 128
    return t                                        # ragged last block (writes masked)


def gaussian_fourier_feature_transform(x, B_mat, *, out_dtype=None):
    """Pallas TPU forward of GaussianFourierFeatureTransform.

    x: (batch, channels, width, height); B_mat: (channels, mapping_size).
    Returns (batch, 2*mapping_size, width, height) = cat([sin(2*pi*x@B), cos(...)], 1)
    in the NCHW layout of the PyTorch module.
    Tip: pass out_dtype=jnp.bfloat16 when the consumer tolerates it -- the 2M-wide
    writeback dominates HBM traffic and bf16 halves it.
    """
    assert x.ndim == 4, f"Expected 4D input (got {x.ndim}D input)"
    batches, channels, width, height = x.shape
    assert channels == B_mat.shape[0], (
        f"Expected input to have {B_mat.shape[0]} channels (got {channels} channels)"
    )
    mapping_size = B_mat.shape[1]
    # Sublane alignment of the cos half of the fused output (avoids masked vst.msk).
    # TODO(synk): pad mapping_size to a multiple of 8 (and drop pad rows) if callers
    # ever need unaligned mapping sizes.
    assert mapping_size % 8 == 0, "mapping_size must be a multiple of 8"

    out_dtype = x.dtype if out_dtype is None else out_dtype
    out_bytes = jnp.dtype(out_dtype).itemsize

    # (M, C), unscaled: the 2*pi factor lives inside the kernel's range reduction.
    bT = jnp.asarray(B_mat, jnp.float32).T

    wh = width * height
    x3 = x.reshape(batches, channels, wh)            # free reshape of NCHW

    # ---- chip-dependent tile / VMEM budget -------------------------------------
    vmem_cap = _vmem_capacity_bytes()
    if vmem_cap >= 96 * 1024 * 1024:                  # v5e / v6e class (128 MiB VMEM)
        budget = 40 * 1024 * 1024
        lane_cap = 8192
        vmem_limit = 64 * 1024 * 1024
    else:                                             # v7x class (64 MiB per TC)
        budget = 12 * 1024 * 1024
        lane_cap = 2048
        vmem_limit = 32 * 1024 * 1024

    # Per-column VMEM: double-buffered fused output + double-buffered input, plus a
    # conservative allowance for f32 intermediates of shape (M, tile_s) in the body.
    per_col = (2 * (2 * mapping_size) * out_bytes
               + 2 * channels * 4
               + 8 * mapping_size * 4)
    target = max(256, min(lane_cap, (budget // per_col) // 128 * 128))
    tile_s = _choose_spatial_tile(wh, target)

    # Give the two TensorCores on v7x (and megacore sharding in general) at least two
    # parallel grid steps to work on when the whole problem fits in one tile.
    n_tiles = pl.cdiv(wh, tile_s)
    if batches * n_tiles < 2 and tile_s % 256 == 0:
        tile_s //= 2
        n_tiles = pl.cdiv(wh, tile_s)

    grid = (batches, n_tiles)
    n = batches * wh

    out = pl.pallas_call(
        _fourier_kernel,
        out_shape=jax.ShapeDtypeStruct((batches, 2 * mapping_size, wh), out_dtype),
        grid_spec=pltpu.PrefetchScalarGridSpec(
            num_scalar_prefetch=0,
            grid=grid,
            in_specs=[
                pl.BlockSpec((None, channels, tile_s), lambda b, j: (b, 0, j)),
                pl.BlockSpec((mapping_size, channels), lambda b, j: (0, 0)),
            ],
            out_specs=pl.BlockSpec(
                (None, 2 * mapping_size, tile_s), lambda b, j: (b, 0, j)
            ),
        ),
        compiler_params=pltpu.CompilerParams(
            dimension_semantics=("parallel", "parallel"),
            vmem_limit_bytes=vmem_limit,
        ),
        cost_estimate=pl.CostEstimate(
            flops=n * mapping_size * (2 * channels + 40),
            transcendentals=0,
            bytes_accessed=(
                n * channels * 4
                + mapping_size * channels * 4
                + 2 * n * mapping_size * out_bytes
            ),
        ),
    )(x3, bT)

    # (B, 2M, W*H) -> (B, 2M, W, H): free row-major reshape; rows [:M] are sin and
    # rows [M:] are cos, matching torch.cat([sin(y), cos(y)], dim=1).
    return out.reshape(batches, 2 * mapping_size, width, height)


def reference(x, B_mat):
    """Pure-JAX mirror of the PyTorch module (f32, HIGHEST-precision matmul)."""
    batches, channels, width, height = x.shape
    mapping_size = B_mat.shape[1]
    xf = jnp.transpose(x, (0, 2, 3, 1)).reshape(-1, channels)
    y = jnp.dot(xf, B_mat, precision=jax.lax.Precision.HIGHEST)
    y = y.reshape(batches, width, height, mapping_size)
    y = jnp.transpose(y, (0, 3, 1, 2))
    y = 2.0 * math.pi * y
    return jnp.concatenate([jnp.sin(y), jnp.cos(y)], axis=1)


if __name__ == "__main__":
    key = jax.random.PRNGKey(0)
    k_x, k_b = jax.random.split(key)

    batch, channels, width, height = 2, 4, 16, 16
    mapping_size = 128
    scale = 10.0

    x = jax.random.normal(k_x, (batch, channels, width, height), dtype=jnp.float32)
    # Deterministic stand-in for torch.randn(num_input_channels, mapping_size) * scale
    B_mat = jax.random.normal(k_b, (channels, mapping_size), dtype=jnp.float32) * scale

    out = gaussian_fourier_feature_transform(x, B_mat)
    out = jax.block_until_ready(out)

    ref = reference(x, B_mat)
    assert out.shape == (batch, 2 * mapping_size, width, height), out.shape
    # Phases reach O(500) rad at scale=10, so independent f32 matmul/reduction
    # orderings legitimately differ by up to a few 1e-4 in sin/cos output.
    assert jnp.allclose(out, ref, atol=1e-3, rtol=1e-3), float(
        jnp.max(jnp.abs(out - ref))
    )
    print("KERNEL_OK")
</pallas_src>

<mosaic_0001>
module attributes {stable_mosaic.version = 11 : i64} {
  func.func @_fourier_kernel(%arg0: i32, %arg1: i32, %arg2: memref<1x4x256xf32, #tpu.memory_space<vmem>>, %arg3: memref<128x4xf32, #tpu.memory_space<vmem>>, %arg4: memref<1x256x256xf32, #tpu.memory_space<vmem>>) attributes {dimension_semantics = [#tpu.dimension_semantics<parallel>, #tpu.dimension_semantics<parallel>], iteration_bounds = array<i64: 2, 1>, scalar_prefetch = 0 : i64, scratch_operands = 0 : i64, tpu.core_type = #tpu.core_type<tc>, window_params = [{transform_indices = @transform_0, window_bounds = array<i64: 1, 4, 256>}, {pipeline_mode = #tpu.pipeline_mode<synchronous>, transform_indices = @transform_1, window_bounds = array<i64: 128, 4>}, {transform_indices = @transform_2, window_bounds = array<i64: 1, 256, 256>}]} {
    %c0 = arith.constant 0 : index
    %c0_0 = arith.constant 0 : index
    %0 = vector.load %arg3[%c0, %c0_0] : memref<128x4xf32, #tpu.memory_space<vmem>>, vector<128x4xf32>
    %c0_1 = arith.constant 0 : index
    %c0_2 = arith.constant 0 : index
    %c0_3 = arith.constant 0 : index
    %1 = vector.load %arg2[%c0_1, %c0_2, %c0_3] : memref<1x4x256xf32, #tpu.memory_space<vmem>>, vector<1x4x256xf32>
    %2 = vector.shape_cast %1 : vector<1x4x256xf32> to vector<4x256xf32>
    %cst = arith.constant dense<0.000000e+00> : vector<128x256xf32>
    %3 = tpu.matmul %0, %2, %cst {dimension_numbers = #tpu.dot_dimension_numbers<[1], [0], [0], [1], [0, 0, 1, 1], [], []>, precision = #tpu.contract_precision<fp32>} : vector<128x4xf32>, vector<4x256xf32>, vector<128x256xf32> -> vector<128x256xf32>
    %cst_4 = arith.constant 4.000000e+00 : f32
    %4 = vector.broadcast %cst_4 : f32 to vector<128x256xf32>
    %5 = arith.mulf %4, %3 : vector<128x256xf32>
    %6 = math.roundeven %5 : vector<128x256xf32>
    %cst_5 = arith.constant 2.500000e-01 : f32
    %7 = vector.broadcast %cst_5 : f32 to vector<128x256xf32>
    %8 = arith.mulf %7, %6 : vector<128x256xf32>
    %9 = arith.subf %3, %8 : vector<128x256xf32>
    %cst_6 = arith.constant 6.28318548 : f32
    %10 = vector.broadcast %cst_6 : f32 to vector<128x256xf32>
    %11 = arith.mulf %10, %9 : vector<128x256xf32>
    %12 = arith.mulf %11, %11 : vector<128x256xf32>
    %cst_7 = arith.constant -1.98412701E-4 : f32
    %13 = vector.broadcast %cst_7 : f32 to vector<128x256xf32>
    %14 = arith.mulf %12, %13 : vector<128x256xf32>
    %cst_8 = arith.constant 0.00833333377 : f32
    %15 = vector.broadcast %cst_8 : f32 to vector<128x256xf32>
    %16 = arith.addf %15, %14 : vector<128x256xf32>
    %17 = arith.mulf %12, %16 : vector<128x256xf32>
    %cst_9 = arith.constant -0.166666672 : f32
    %18 = vector.broadcast %cst_9 : f32 to vector<128x256xf32>
    %19 = arith.addf %18, %17 : vector<128x256xf32>
    %20 = arith.mulf %12, %19 : vector<128x256xf32>
    %21 = arith.mulf %11, %20 : vector<128x256xf32>
    %22 = arith.addf %11, %21 : vector<128x256xf32>
    %cst_10 = arith.constant 2.48015876E-5 : f32
    %23 = vector.broadcast %cst_10 : f32 to vector<128x256xf32>
    %24 = arith.mulf %12, %23 : vector<128x256xf32>
    %cst_11 = arith.constant -0.00138888892 : f32
    %25 = vector.broadcast %cst_11 : f32 to vector<128x256xf32>
    %26 = arith.addf %25, %24 : vector<128x256xf32>
    %27 = arith.mulf %12, %26 : vector<128x256xf32>
    %cst_12 = arith.constant 0.0416666679 : f32
    %28 = vector.broadcast %cst_12 : f32 to vector<128x256xf32>
    %29 = arith.addf %28, %27 : vector<128x256xf32>
    %30 = arith.mulf %12, %29 : vector<128x256xf32>
    %cst_13 = arith.constant -5.000000e-01 : f32
    %31 = vector.broadcast %cst_13 : f32 to vector<128x256xf32>
    %32 = arith.addf %31, %30 : vector<128x256xf32>
    %33 = arith.mulf %12, %32 : vector<128x256xf32>
    %cst_14 = arith.constant 1.000000e+00 : f32
    %34 = vector.broadcast %cst_14 : f32 to vector<128x256xf32>
    %35 = arith.addf %34, %33 : vector<128x256xf32>
    %36 = arith.fptosi %6 : vector<128x256xf32> to vector<128x256xi32>
    %c1_i32 = arith.constant 1 : i32
    %37 = vector.broadcast %c1_i32 : i32 to vector<128x256xi32>
    %38 = arith.andi %36, %37 : vector<128x256xi32>
    %c0_i32 = arith.constant 0 : i32
    %39 = vector.broadcast %c0_i32 : i32 to vector<128x256xi32>
    %40 = arith.cmpi ne, %38, %39 : vector<128x256xi32>
    %c2_i32 = arith.constant 2 : i32
    %41 = vector.broadcast %c2_i32 : i32 to vector<128x256xi32>
    %42 = arith.andi %36, %41 : vector<128x256xi32>
    %c0_i32_15 = arith.constant 0 : i32
    %43 = vector.broadcast %c0_i32_15 : i32 to vector<128x256xi32>
    %44 = arith.cmpi ne, %42, %43 : vector<128x256xi32>
    %c1_i32_16 = arith.constant 1 : i32
    %45 = vector.broadcast %c1_i32_16 : i32 to vector<128x256xi32>
    %46 = arith.addi %36, %45 : vector<128x256xi32>
    %c2_i32_17 = arith.constant 2 : i32
    %47 = vector.broadcast %c2_i32_17 : i32 to vector<128x256xi32>
    %48 = arith.andi %46, %47 : vector<128x256xi32>
    %c0_i32_18 = arith.constant 0 : i32
    %49 = vector.broadcast %c0_i32_18 : i32 to vector<128x256xi32>
    %50 = arith.cmpi ne, %48, %49 : vector<128x256xi32>
    %51 = arith.select %40, %35, %22 : vector<128x256xi1>, vector<128x256xf32>
    %52 = arith.select %40, %22, %35 : vector<128x256xi1>, vector<128x256xf32>
    %cst_19 = arith.constant 0.000000e+00 : f32
    %53 = vector.broadcast %cst_19 : f32 to vector<128x256xf32>
    %54 = arith.subf %53, %51 : vector<128x256xf32>
    %55 = arith.select %44, %54, %51 : vector<128x256xi1>, vector<128x256xf32>
    %cst_20 = arith.constant 0.000000e+00 : f32
    %56 = vector.broadcast %cst_20 : f32 to vector<128x256xf32>
    %57 = arith.subf %56, %52 : vector<128x256xf32>
    %58 = arith.select %50, %57, %52 : vector<128x256xi1>, vector<128x256xf32>
    %c0_21 = arith.constant 0 : index
    %c0_22 = arith.constant 0 : index
    %c0_23 = arith.constant 0 : index
    %59 = vector.load %arg4[%c0_21, %c0_22, %c0_23] : memref<1x256x256xf32, #tpu.memory_space<vmem>>, vector<1x128x256xf32>
    %60 = vector.shape_cast %59 : vector<1x128x256xf32> to vector<128x256xf32>
    %61 = vector.shape_cast %55 : vector<128x256xf32> to vector<1x128x256xf32>
    tpu.vector_store %arg4[%c0_21, %c0_22, %c0_23], %61 {strides = array<i32>} : memref<1x256x256xf32, #tpu.memory_space<vmem>>, vector<1x128x256xf32>,
    %c0_24 = arith.constant 0 : index
    %c128 = arith.constant 128 : index
    %c0_25 = arith.constant 0 : index
    %62 = vector.load %arg4[%c0_24, %c128, %c0_25] : memref<1x256x256xf32, #tpu.memory_space<vmem>>, vector<1x128x256xf32>
    %63 = vector.shape_cast %62 : vector<1x128x256xf32> to vector<128x256xf32>
    %64 = vector.shape_cast %58 : vector<128x256xf32> to vector<1x128x256xf32>
    tpu.vector_store %arg4[%c0_24, %c128, %c0_25], %64 {strides = array<i32>} : memref<1x256x256xf32, #tpu.memory_space<vmem>>, vector<1x128x256xf32>,
    return
  }
  func.func @transform_0(%arg0: i32, %arg1: i32) -> (i32, i32, i32) {
    %c0_i32 = arith.constant 0 : i32
    %c0_i32_0 = arith.constant 0 : i32
    return %arg0, %c0_i32, %arg1 : i32, i32, i32
  }
  func.func @transform_1(%arg0: i32, %arg1: i32) -> (i32, i32) {
    %c0_i32 = arith.constant 0 : i32
    %c0_i32_0 = arith.constant 0 : i32
    %c0_i32_1 = arith.constant 0 : i32
    return %c0_i32, %c0_i32_0 : i32, i32
  }
  func.func @transform_2(%arg0: i32, %arg1: i32) -> (i32, i32, i32) {
    %c0_i32 = arith.constant 0 : i32
    %c0_i32_0 = arith.constant 0 : i32
    return %arg0, %c0_i32, %arg1 : i32, i32, i32
  }
}

</mosaic_0001>

<llo_original>
// kernel: tpu_custom_call.1
$region0: #{tpu_custom_call.1}
  #allocation0 [shape = 'u32[]', space=smem, size = 0x4, offset = 0x4, fixed_abs, tag = 'smem constant byte address 0x4 - core index']
  #allocation1 [shape = 'u32[144,128]{1,0:T(1,128)}', space=vmem, size = 0x12000, scoped, tag = 'internal scratch']
  %s0 = inlined_call_operand.hbm [shape: f32[2,4,256], index: 0, kind: input, shape index: {}]
  %s1 = inlined_call_operand.hbm [shape: f32[128,4], index: 1, kind: input, shape index: {}]
  %s2 = inlined_call_operand.hbm [shape: f32[2,256,256], index: 2, kind: output, shape index: {}]
  %s3 = sld [smem:[#allocation0]]
  $region49: #{tpu_custom_call.1} parent=0
    _
  %s5 = ssub.s32 1, %s3
  %s6 = scalar_select 0, %s5, %s3
  $region1: #{tpu_custom_call.1} parent=0
    #allocation2 [shape = 'u8[8192]{0}', space=vmem, size = 0x2000, scoped, tag = 'input window, operand 0']
    #allocation3 [shape = 's32[2]{0}', space=sflag, size = 0x8, scoped, tag = 'scoped memory for tpu_custom_call.1']
    #allocation4 [shape = 's32[2]{0}', space=sflag, size = 0x8, scoped, tag = 'scoped memory for tpu_custom_call.1']
    #allocation5 [shape = 'u8[65536]{0}', space=vmem, size = 0x10000, scoped, tag = 'input window, operand 1, single buffered']
    #allocation6 [shape = 's32[1]{0}', space=sflag, size = 0x4, scoped, tag = 'scoped memory for tpu_custom_call.1']
    #allocation7 [shape = 'u8[524288]{0}', space=vmem, size = 0x80000, scoped, tag = 'output window, operand 0']
    %7 = vsyncpa [#allocation3], 0
    %s8 = scalar_lea.sflag [#allocation3], 1
    %9 = vsyncpa %s8, 0
    %10 = vsyncpa [#allocation6], 0
    %11 = vsyncpa [#allocation4], 0
    %s12 = scalar_lea.sflag [#allocation4], 1
    %13 = vsyncpa %s12, 0
    loop: start=0, step=1, limit=4
    $region2: #{tpu_custom_call.1} parent=1 // loop_pre_header
      _
    $region3: #{tpu_custom_call.1} parent=1 // loop_header
      %s15 = sphi 0, %s19
      %p16 = scmp.ge.s32.totalorder %s15, 4
      %s22 = sphi 0, %s34
      %s23 = sphi 0, %s30
      %s24 = sphi 0, %s22
      %s25 = sphi 0, %s23
      %s26 = sphi 0, %s24
      %s27 = sphi 0, %s25
      %s39 = sphi 0, %s41
      %s42 = sphi 0, %s39
      %s43 = sphi 0, %s42
      %s59 = sphi 0, %s43
      %s63 = sphi 0, %s63
      %s65 = sphi 0, %s63
      %s66 = sphi 0, %s65
      %s80 = sphi 0, %s66
      %s88 = sphi 0, %s90
      %s91 = sphi 0, %s88
      %s92 = sphi 0, %s91
      %s108 = sphi 0, %s92
    $region4: #{tpu_custom_call.1} parent=1 // loop_header_branch
      %18 = sbr.rel (%p16) target = $region8
    $region5: #{tpu_custom_call.1} parent=1 // loop_body
      %s20 = ssub.s32 %s15, 1
      %s21 = ssub.s32 %s15, 2
      %s28 = sadd.s32 1, %s23
      %p29 = scmp.ge.s32.totalorder %s28, 1
      %s30 = scalar_select %p29, 0, %s28
      %s31 = sadd.s32 1, %s22
      %s32 = scalar_select %p29, %s31, %s22
      %p33 = scmp.ge.s32.totalorder %s32, 2
      %s34 = scalar_select %p33, 0, %s32
      %s35 = ssub.s32 %s22, %s34
      %s36 = ssub.s32 %s23, %s30
      %s37 = sor.u32 %s35, %s36
      %p38 = scmp.eq.s32.totalorder %s37, 0
      %s40 = sadd.s32 %s39, 1
      %s41 = scalar_select %p38, %s39, %s40
      %p44 = pneg %p38
      %p45 = scmp.eq.s32.totalorder %s15, 1
      %p46 = por %p44, %p45
      %p47 = scmp.ne.s32.totalorder %s39, %s42
      %p48 = scmp.eq.s32.totalorder %s15, 0
      %p49 = por %p47, %p48
      %p50 = scmp.ne.s32.totalorder %s39, %s42
      %p51 = scmp.eq.s32.totalorder %s20, 1
      %p52 = por %p50, %p51
      %p53 = scmp.ne.s32.totalorder %s42, %s43
      %p54 = scmp.eq.s32.totalorder %s20, 0
      %p55 = por %p53, %p54
      %p56 = scmp.ne.s32.totalorder %s42, %s43
      %p57 = scmp.eq.s32.totalorder %s21, 1
      %p58 = por %p56, %p57
      %p60 = scmp.ne.s32.totalorder %s43, %s59
      %p61 = scmp.eq.s32.totalorder %s21, 0
      %p62 = por %p60, %p61
      %s64 = sadd.s32 %s63, 1
      %p67 = scmp.eq.s32.totalorder %s15, 1
      %p68 = scmp.ne.s32.totalorder %s63, %s65
      %p69 = scmp.eq.s32.totalorder %s15, 0
      %p70 = por %p68, %p69
      %p71 = scmp.ne.s32.totalorder %s63, %s65
      %p72 = scmp.eq.s32.totalorder %s20, 1
      %p73 = por %p71, %p72
      %p74 = scmp.ne.s32.totalorder %s65, %s66
      %p75 = scmp.eq.s32.totalorder %s20, 0
      %p76 = por %p74, %p75
      %p77 = scmp.ne.s32.totalorder %s65, %s66
      %p78 = scmp.eq.s32.totalorder %s21, 1
      %p79 = por %p77, %p78
      %p81 = scmp.ne.s32.totalorder %s66, %s80
      %p82 = scmp.eq.s32.totalorder %s21, 0
      %p83 = por %p81, %p82
      %s84 = ssub.s32 %s22, %s34
      %s85 = ssub.s32 %s23, %s30
      %s86 = sor.u32 %s84, %s85
      %p87 = scmp.eq.s32.totalorder %s86, 0
      %s89 = sadd.s32 %s88, 1
      %s90 = scalar_select %p87, %s88, %s89
      %p93 = pneg %p87
      %p94 = scmp.eq.s32.totalorder %s15, 1
      %p95 = por %p93, %p94
      %p96 = scmp.ne.s32.totalorder %s88, %s91
      %p97 = scmp.eq.s32.totalorder %s15, 0
      %p98 = por %p96, %p97
      %p99 = scmp.ne.s32.totalorder %s88, %s91
      %p100 = scmp.eq.s32.totalorder %s20, 1
      %p101 = por %p99, %p100
      %p102 = scmp.ne.s32.totalorder %s91, %s92
      %p103 = scmp.eq.s32.totalorder %s20, 0
      %p104 = por %p102, %p103
      %p105 = scmp.ne.s32.totalorder %s91, %s92
      %p106 = scmp.eq.s32.totalorder %s21, 1
      %p107 = por %p105, %p106
      %p109 = scmp.ne.s32.totalorder %s92, %s108
      %p110 = scmp.eq.s32.totalorder %s21, 0
      %p111 = por %p109, %p110
      %p112 = scmp.le.s32.totalorder 1, %s15
      %p113 = scmp.lt.s32.totalorder %s15, 3
      %p114 = pnand %p112, %p113
      %p115 = pneg %p114
      // Predicated region
      $region9: #{tpu_custom_call.1} parent=5 // pred_check
        _
      $region10: #{tpu_custom_call.1} parent=5 // pred_check_branch
        %117 = sbr.rel (%p114) target = $region12
      $region11: #{tpu_custom_call.1} parent=5 // pred_region
        %s118 = ssub.s32 %s15, 1
        // Predicated region
        $region13: #{tpu_custom_call.1} parent=11 // pred_check
          %p119 = pneg %p76
        $region14: #{tpu_custom_call.1} parent=11 // pred_check_branch
          %121 = sbr.rel (%p119) target = $region16
        $region15: #{tpu_custom_call.1} parent=11 // pred_region
          %s123 = ssub.s32 2048, 2048
          %124 = vsyncadd [#allocation6], %s123
          %s125 = sshll.u32 [#allocation5], 4
          %s126 = int_to_ptr.vmem [resolvable:$true] %s125
          %131 = dma.hbm_to_vmem [thread:$0]  %s1, 2048, %s126, [#allocation6], 128, 128, 8
        $region16: #{tpu_custom_call.1} parent=11 // pred_fallthru
          _
      $region12: #{tpu_custom_call.1} parent=5 // pred_fallthru
        _
      %p132 = scmp.lt.s32.totalorder %s15, 2
      // Predicated region
      $region17: #{tpu_custom_call.1} parent=5 // pred_check
        %p133 = pneg %p132
      $region18: #{tpu_custom_call.1} parent=5 // pred_check_branch
        %135 = sbr.rel (%p133) target = $region20
      $region19: #{tpu_custom_call.1} parent=5 // pred_region
        // Predicated region
        $region21: #{tpu_custom_call.1} parent=19 // pred_check
          %p136 = pneg %p49
        $region22: #{tpu_custom_call.1} parent=19 // pred_check_branch
          %138 = sbr.rel (%p136) target = $region24
        $region23: #{tpu_custom_call.1} parent=19 // pred_region
          %s139 = sand.u32 %s39, 1
          %s140 = scalar_lea.sflag [#allocation3], %s139
          %s141 = sand.u32 %s39, 1
          %s142 = smul.addr %s141, 8
          %s143 = scalar_lea.vmem [#allocation2], %s142
          %s144 = smul.u32 2, %s23
          %s146 = ssub.s32 128, 128
          %147 = vsyncadd %s140, %s146
          %s148 = smul.addr %s22, 2
          %s149 = sadd.s32 %s144, %s148
          %s150 = smul.addr %s149, 64
          %s151 = scalar_lea.hbm %s0, %s150
          %s153 = sshll.u32 %s143, 4
          %s154 = int_to_ptr.vmem [resolvable:$true] %s153
          %156 = dma.hbm_to_vmem [thread:$0]  %s151, 128, %s154, %s140
        $region24: #{tpu_custom_call.1} parent=19 // pred_fallthru
          _
      $region20: #{tpu_custom_call.1} parent=5 // pred_fallthru
        _
      %p157 = scmp.le.s32.totalorder 1, %s15
      %p158 = scmp.lt.s32.totalorder %s15, 3
      %p159 = pnand %p157, %p158
      %p160 = pneg %p159
      // Predicated region
      $region25: #{tpu_custom_call.1} parent=5 // pred_check
        _
      $region26: #{tpu_custom_call.1} parent=5 // pred_check_branch
        %162 = sbr.rel (%p159) target = $region28
      $region27: #{tpu_custom_call.1} parent=5 // pred_region
        %s163 = ssub.s32 %s15, 1
        %s164 = sand.u32 %s42, 1
        %s165 = scalar_lea.sflag [#allocation3], %s164
        %s166 = sand.u32 %s42, 1
        %s167 = smul.addr %s166, 8
        %s168 = scalar_lea.vmem [#allocation2], %s167
        // Predicated region
        $region29: #{tpu_custom_call.1} parent=27 // pred_check
          %p169 = pneg %p55
        $region30: #{tpu_custom_call.1} parent=27 // pred_check_branch
          %171 = sbr.rel (%p169) target = $region32
        $region31: #{tpu_custom_call.1} parent=27 // pred_region
          %172 = dma.done %s165, 128
        $region32: #{tpu_custom_call.1} parent=27 // pred_fallthru
          _
        // Predicated region
        $region33: #{tpu_custom_call.1} parent=27 // pred_check
          %p173 = pneg %p76
        $region34: #{tpu_custom_call.1} parent=27 // pred_check_branch
          %175 = sbr.rel (%p173) target = $region36
        $region35: #{tpu_custom_call.1} parent=27 // pred_region
          %176 = dma.done [#allocation6], 2048
        $region36: #{tpu_custom_call.1} parent=27 // pred_fallthru
          _
        %s177 = sand.u32 %s42, 1
        %s178 = scalar_lea.sflag [#allocation3], %s177
        %s179 = sand.u32 %s42, 1
        %s180 = smul.addr %s179, 8
        %s181 = scalar_lea.vmem [#allocation2], %s180
        %p182 = pneg %p55
        %p183 = pneg %p52
        %p184 = pneg %p76
        %p185 = pneg %p73
        %p186 = pneg %p104
        %p187 = pneg %p101
        %s188 = sand.u32 %s91, 1
        %s189 = scalar_lea.sflag [#allocation4], %s188
        %s190 = sand.u32 %s91, 1
        %s191 = smul.addr %s190, 512
        %s192 = scalar_lea.vmem [#allocation7], %s191
        %s193 = smul.u32 2, %s25
        %s194 = smul.u32 2, %s25
        %v195 = vld [vmem:[#allocation5] sm:$0xff]
        %v196 = vld [vmem:[#allocation5 + $0x8] sm:$0xff]
        %v197 = vld [vmem:[#allocation5 + $0x10] sm:$0xff]
        %v198 = vld [vmem:[#allocation5 + $0x18] sm:$0xff]
        %v199 = vld [vmem:[#allocation5 + $0x20] sm:$0xff]
        %v200 = vld [vmem:[#allocation5 + $0x28] sm:$0xff]
        %v201 = vld [vmem:[#allocation5 + $0x30] sm:$0xff]
        %v202 = vld [vmem:[#allocation5 + $0x38] sm:$0xff]
        %v203 = vld [vmem:[#allocation5 + $0x40] sm:$0xff]
        %v204 = vld [vmem:[#allocation5 + $0x48] sm:$0xff]
        %v205 = vld [vmem:[#allocation5 + $0x50] sm:$0xff]
        %v206 = vld [vmem:[#allocation5 + $0x58] sm:$0xff]
        %v207 = vld [vmem:[#allocation5 + $0x60] sm:$0xff]
        %v208 = vld [vmem:[#allocation5 + $0x68] sm:$0xff]
        %v209 = vld [vmem:[#allocation5 + $0x70] sm:$0xff]
        %v210 = vld [vmem:[#allocation5 + $0x78] sm:$0xff]
        %v211 = vld [vmem:[%s168] sm:$0xff]
        %v213 = vcombine.high %v211, %v211
        %vm214 = vcmask 31744
        %v216 = vsel %vm214, %v195, 0
        %v219 = vsel %vm214, %v196, 0
        %v222 = vsel %vm214, %v197, 0
        %v225 = vsel %vm214, %v198, 0
        %v228 = vsel %vm214, %v199, 0
        %v231 = vsel %vm214, %v200, 0
        %v234 = vsel %vm214, %v201, 0
        %v237 = vsel %vm214, %v202, 0
        %v240 = vsel %vm214, %v203, 0
        %v243 = vsel %vm214, %v204, 0
        %v246 = vsel %vm214, %v205, 0
        %v249 = vsel %vm214, %v206, 0
        %v252 = vsel %vm214, %v207, 0
        %v255 = vsel %vm214, %v208, 0
        %v258 = vsel %vm214, %v209, 0
        %v261 = vsel %vm214, %v210, 0
        %vm263 = vcmask 1043456
        %v264 = vsel %vm263, %v211, 0
        %v266 = vsel %vm263, %v213, 0
        %v268 = vand.u32 %v266, 4294901760
        %269 = vmatprep.subr.mxu0 %v268
        %v270 = vand.u32 %v264, 4294901760
        %271 = vmatpush1.msra.mxu0 %v270
        %272 = vmatprep.subr.mxu0 0.0
        %273 = vmatpush1.msra.mxu0 0.0
        %274 = vmatprep.subr.mxu0 0.0
        %275 = vmatpush1.msra.mxu0 0.0
        %276 = vmatprep.subr.mxu0 0.0
        %277 = vmatpush1.msra.mxu0 0.0
        %278 = vmatprep.subr.mxu0 0.0
        %279 = vmatpush1.msra.mxu0 0.0
        %280 = vmatprep.subr.mxu0 0.0
        %281 = vmatpush1.msra.mxu0 0.0
        %282 = vmatprep.subr.mxu0 0.0
        %283 = vmatpush1.msra.mxu0 0.0
        %284 = vmatprep.subr.mxu0 0.0
        %285 = vmatpush1.msra.mxu0 0.0
        %286 = vmatprep.subr.mxu0 0.0
        %287 = vmatpush1.msra.mxu0 0.0
        %288 = vmatprep.subr.mxu0 0.0
        %289 = vmatpush1.msra.mxu0 0.0
        %290 = vmatprep.subr.mxu0 0.0
        %291 = vmatpush1.msra.mxu0 0.0
        %292 = vmatprep.subr.mxu0 0.0
        %293 = vmatpush1.msra.mxu0 0.0
        %294 = vmatprep.subr.mxu0 0.0
        %295 = vmatpush1.msra.mxu0 0.0
        %296 = vmatprep.subr.mxu0 0.0
        %297 = vmatpush1.msra.mxu0 0.0
        %298 = vmatprep.subr.mxu0 0.0
        %299 = vmatpush1.msra.mxu0 0.0
        %300 = vmatprep.subr.mxu0 0.0
        %301 = vmatpush1.msra.mxu0 0.0
        %302 = vmatprep.subr.mxu0 0.0
        %303 = vmatpush1.msra.mxu0 0.0
        %304 = vmatprep.subr.mxu0 0.0
        %305 = vmatpush1.msra.mxu0 0.0
        %306 = vmatprep.subr.mxu0 0.0
        %307 = vmatpush1.msra.mxu0 0.0
        %308 = vmatprep.subr.mxu0 0.0
        %309 = vmatpush1.msra.mxu0 0.0
        %310 = vmatprep.subr.mxu0 0.0
        %311 = vmatpush1.msra.mxu0 0.0
        %312 = vmatprep.subr.mxu0 0.0
        %313 = vmatpush1.msra.mxu0 0.0
        %314 = vmatprep.subr.mxu0 0.0
        %315 = vmatpush1.msra.mxu0 0.0
        %316 = vmatprep.subr.mxu0 0.0
        %317 = vmatpush1.msra.mxu0 0.0
        %318 = vmatprep.subr.mxu0 0.0
        %319 = vmatpush1.msra.mxu0 0.0
        %320 = vmatprep.subr.mxu0 0.0
        %321 = vmatpush1.msra.mxu0 0.0
        %322 = vmatprep.subr.mxu0 0.0
        %323 = vmatpush1.msra.mxu0 0.0
        %324 = vmatprep.subr.mxu0 0.0
        %325 = vmatpush1.msra.mxu0 0.0
        %326 = vmatprep.subr.mxu0 0.0
        %327 = vmatpush1.msra.mxu0 0.0
        %328 = vmatprep.subr.mxu0 0.0
        %329 = vmatpush1.msra.mxu0 0.0
        %330 = vmatprep.subr.mxu0 0.0
        %331 = vmatpush1.msra.mxu0 0.0
        %332 = vmatprep.subr.mxu0 0.0
        %333 = vmatpush1.msra.mxu0 0.0
        %334 = vmatprep.mubr.f32.mxu0 0.0
        %v335 = vand.u32 %v216, 4294901760
        %v336 = vsub.f32 %v216, %v335
        %v337 = vand.u32 %v336, 4294901760
        %v338 = vsub.f32 %v336, %v337
        %v339 = vand.u32 %v338, 4294901760
        %340 = vmatmul.mubr.f32.gmra.mrb[0].mxu0 %v339
        %v341 = vpop.f32.mrb[0].mxu0
        %v342 = vadd.f32 0.0, %v341
        %v343 = vpop.f32.mrb[0].mxu0
        %v344 = vadd.f32 0.0, %v343
        %345 = vmatprep.mubr.f32.mxu0 0.0
        %v346 = vand.u32 %v219, 4294901760
        %v347 = vsub.f32 %v219, %v346
        %v348 = vand.u32 %v347, 4294901760
        %v349 = vsub.f32 %v347, %v348
        %v350 = vand.u32 %v349, 4294901760
        %351 = vmatmul.mubr.f32.gmra.mrb[0].mxu0 %v350
        %v352 = vpop.f32.mrb[0].mxu0
        %v353 = vadd.f32 0.0, %v352
        %v354 = vpop.f32.mrb[0].mxu0
        %v355 = vadd.f32 0.0, %v354
        %356 = vmatprep.mubr.f32.mxu0 0.0
        %v357 = vand.u32 %v222, 4294901760
        %v358 = vsub.f32 %v222, %v357
        %v359 = vand.u32 %v358, 4294901760
        %v360 = vsub.f32 %v358, %v359
        %v361 = vand.u32 %v360, 4294901760
        %362 = vmatmul.mubr.f32.gmra.mrb[0].mxu0 %v361
        %v363 = vpop.f32.mrb[0].mxu0
        %v364 = vadd.f32 0.0, %v363
        %v365 = vpop.f32.mrb[0].mxu0
        %v366 = vadd.f32 0.0, %v365
        %367 = vmatprep.mubr.f32.mxu0 0.0
        %v368 = vand.u32 %v225, 4294901760
        %v369 = vsub.f32 %v225, %v368
        %v370 = vand.u32 %v369, 4294901760
        %v371 = vsub.f32 %v369, %v370
        %v372 = vand.u32 %v371, 4294901760
        %373 = vmatmul.mubr.f32.gmra.mrb[0].mxu0 %v372
        %v374 = vpop.f32.mrb[0].mxu0
        %v375 = vadd.f32 0.0, %v374
        %v376 = vpop.f32.mrb[0].mxu0
        %v377 = vadd.f32 0.0, %v376
        %378 = vmatprep.mubr.f32.mxu0 0.0
        %v379 = vand.u32 %v228, 4294901760
        %v380 = vsub.f32 %v228, %v379
        %v381 = vand.u32 %v380, 4294901760
        %v382 = vsub.f32 %v380, %v381
        %v383 = vand.u32 %v382, 4294901760
        %384 = vmatmul.mubr.f32.gmra.mrb[0].mxu0 %v383
        %v385 = vpop.f32.mrb[0].mxu0
        %v386 = vadd.f32 0.0, %v385
        %v387 = vpop.f32.mrb[0].mxu0
        %v388 = vadd.f32 0.0, %v387
        %389 = vmatprep.mubr.f32.mxu0 0.0
        %v390 = vand.u32 %v231, 4294901760
        %v391 = vsub.f32 %v231, %v390
        %v392 = vand.u32 %v391, 4294901760
        %v393 = vsub.f32 %v391, %v392
        %v394 = vand.u32 %v393, 4294901760
        %395 = vmatmul.mubr.f32.gmra.mrb[0].mxu0 %v394
        %v396 = vpop.f32.mrb[0].mxu0
        %v397 = vadd.f32 0.0, %v396
        %v398 = vpop.f32.mrb[0].mxu0
        %v399 = vadd.f32 0.0, %v398
        %400 = vmatprep.mubr.f32.mxu0 0.0
        %v401 = vand.u32 %v234, 4294901760
        %v402 = vsub.f32 %v234, %v401
        %v403 = vand.u32 %v402, 4294901760
        %v404 = vsub.f32 %v402, %v403
        %v405 = vand.u32 %v404, 4294901760
        %406 = vmatmul.mubr.f32.gmra.mrb[0].mxu0 %v405
        %v407 = vpop.f32.mrb[0].mxu0
        %v408 = vadd.f32 0.0, %v407
        %v409 = vpop.f32.mrb[0].mxu0
        %v410 = vadd.f32 0.0, %v409
        %411 = vmatprep.mubr.f32.mxu0 0.0
        %v412 = vand.u32 %v237, 4294901760
        %v413 = vsub.f32 %v237, %v412
        %v414 = vand.u32 %v413, 4294901760
        %v415 = vsub.f32 %v413, %v414
        %v416 = vand.u32 %v415, 4294901760
        %417 = vmatmul.mubr.f32.gmra.mrb[0].mxu0 %v416
        %v418 = vpop.f32.mrb[0].mxu0
        %v419 = vadd.f32 0.0, %v418
        %v420 = vpop.f32.mrb[0].mxu0
        %v421 = vadd.f32 0.0, %v420
        %422 = vmatprep.mubr.f32.mxu0 0.0
        %v423 = vand.u32 %v240, 4294901760
        %v424 = vsub.f32 %v240, %v423
        %v425 = vand.u32 %v424, 4294901760
        %v426 = vsub.f32 %v424, %v425
        %v427 = vand.u32 %v426, 4294901760
        %428 = vmatmul.mubr.f32.gmra.mrb[0].mxu0 %v427
        %v429 = vpop.f32.mrb[0].mxu0
        %v430 = vadd.f32 0.0, %v429
        %v431 = vpop.f32.mrb[0].mxu0
        %v432 = vadd.f32 0.0, %v431
        %433 = vmatprep.mubr.f32.mxu0 0.0
        %v434 = vand.u32 %v243, 4294901760
        %v435 = vsub.f32 %v243, %v434
        %v436 = vand.u32 %v435, 4294901760
        %v437 = vsub.f32 %v435, %v436
        %v438 = vand.u32 %v437, 4294901760
        %439 = vmatmul.mubr.f32.gmra.mrb[0].mxu0 %v438
        %v440 = vpop.f32.mrb[0].mxu0
        %v441 = vadd.f32 0.0, %v440
        %v442 = vpop.f32.mrb[0].mxu0
        %v443 = vadd.f32 0.0, %v442
        %444 = vmatprep.mubr.f32.mxu0 0.0
        %v445 = vand.u32 %v246, 4294901760
        %v446 = vsub.f32 %v246, %v445
        %v447 = vand.u32 %v446, 4294901760
        %v448 = vsub.f32 %v446, %v447
        %v449 = vand.u32 %v448, 4294901760
        %450 = vmatmul.mubr.f32.gmra.mrb[0].mxu0 %v449
        %v451 = vpop.f32.mrb[0].mxu0
        %v452 = vadd.f32 0.0, %v451
        %v453 = vpop.f32.mrb[0].mxu0
        %v454 = vadd.f32 0.0, %v453
        %455 = vmatprep.mubr.f32.mxu0 0.0
        %v456 = vand.u32 %v249, 4294901760
        %v457 = vsub.f32 %v249, %v456
        %v458 = vand.u32 %v457, 4294901760
        %v459 = vsub.f32 %v457, %v458
        %v460 = vand.u32 %v459, 4294901760
        %461 = vmatmul.mubr.f32.gmra.mrb[0].mxu0 %v460
        %v462 = vpop.f32.mrb[0].mxu0
        %v463 = vadd.f32 0.0, %v462
        %v464 = vpop.f32.mrb[0].mxu0
        %v465 = vadd.f32 0.0, %v464
        %466 = vmatprep.mubr.f32.mxu0 0.0
        %v467 = vand.u32 %v252, 4294901760
        %v468 = vsub.f32 %v252, %v467
        %v469 = vand.u32 %v468, 4294901760
        %v470 = vsub.f32 %v468, %v469
        %v471 = vand.u32 %v470, 4294901760
        %472 = vmatmul.mubr.f32.gmra.mrb[0].mxu0 %v471
        %v473 = vpop.f32.mrb[0].mxu0
        %v474 = vadd.f32 0.0, %v473
        %v475 = vpop.f32.mrb[0].mxu0
        %v476 = vadd.f32 0.0, %v475
        %477 = vmatprep.mubr.f32.mxu0 0.0
        %v478 = vand.u32 %v255, 4294901760
        %v479 = vsub.f32 %v255, %v478
        %v480 = vand.u32 %v479, 4294901760
        %v481 = vsub.f32 %v479, %v480
        %v482 = vand.u32 %v481, 4294901760
        %483 = vmatmul.mubr.f32.gmra.mrb[0].mxu0 %v482
        %v484 = vpop.f32.mrb[0].mxu0
        %v485 = vadd.f32 0.0, %v484
        %v486 = vpop.f32.mrb[0].mxu0
        %v487 = vadd.f32 0.0, %v486
        %488 = vmatprep.mubr.f32.mxu0 0.0
        %v489 = vand.u32 %v258, 4294901760
        %v490 = vsub.f32 %v258, %v489
        %v491 = vand.u32 %v490, 4294901760
        %v492 = vsub.f32 %v490, %v491
        %v493 = vand.u32 %v492, 4294901760
        %494 = vmatmul.mubr.f32.gmra.mrb[0].mxu0 %v493
        %v495 = vpop.f32.mrb[0].mxu0
        %v496 = vadd.f32 0.0, %v495
        %v497 = vpop.f32.mrb[0].mxu0
        %v498 = vadd.f32 0.0, %v497
        %499 = vmatprep.mubr.f32.mxu0 0.0
        %v500 = vand.u32 %v261, 4294901760
        %v501 = vsub.f32 %v261, %v500
        %v502 = vand.u32 %v501, 4294901760
        %v503 = vsub.f32 %v501, %v502
        %v504 = vand.u32 %v503, 4294901760
        %505 = vmatmul.mubr.f32.gmra.mrb[0].mxu0 %v504
        %v506 = vpop.f32.mrb[0].mxu0
        %v507 = vadd.f32 0.0, %v506
        %v508 = vpop.f32.mrb[0].mxu0
        %v509 = vadd.f32 0.0, %v508
        %510 = vdwg.mxu0
        %v511 = vand.u32 %v266, 4294901760
        %v512 = vsub.f32 %v266, %v511
        %v513 = vand.u32 %v512, 4294901760
        %v514 = vsub.f32 %v512, %v513
        %v515 = vand.u32 %v514, 4294901760
        %516 = vmatprep.subr.mxu0 %v515
        %v517 = vand.u32 %v264, 4294901760
        %v518 = vsub.f32 %v264, %v517
        %v519 = vand.u32 %v518, 4294901760
        %v520 = vsub.f32 %v518, %v519
        %v521 = vand.u32 %v520, 4294901760
        %522 = vmatpush1.msra.mxu0 %v521
        %523 = vmatprep.subr.mxu0 0.0
        %524 = vmatpush1.msra.mxu0 0.0
        %525 = vmatprep.subr.mxu0 0.0
        %526 = vmatpush1.msra.mxu0 0.0
        %527 = vmatprep.subr.mxu0 0.0
        %528 = vmatpush1.msra.mxu0 0.0
        %529 = vmatprep.subr.mxu0 0.0
        %530 = vmatpush1.msra.mxu0 0.0
        %531 = vmatprep.subr.mxu0 0.0
        %532 = vmatpush1.msra.mxu0 0.0
        %533 = vmatprep.subr.mxu0 0.0
        %534 = vmatpush1.msra.mxu0 0.0
        %535 = vmatprep.subr.mxu0 0.0
        %536 = vmatpush1.msra.mxu0 0.0
        %537 = vmatprep.subr.mxu0 0.0
        %538 = vmatpush1.msra.mxu0 0.0
        %539 = vmatprep.subr.mxu0 0.0
        %540 = vmatpush1.msra.mxu0 0.0
        %541 = vmatprep.subr.mxu0 0.0
        %542 = vmatpush1.msra.mxu0 0.0
        %543 = vmatprep.subr.mxu0 0.0
        %544 = vmatpush1.msra.mxu0 0.0
        %545 = vmatprep.subr.mxu0 0.0
        %546 = vmatpush1.msra.mxu0 0.0
        %547 = vmatprep.subr.mxu0 0.0
        %548 = vmatpush1.msra.mxu0 0.0
        %549 = vmatprep.subr.mxu0 0.0
        %550 = vmatpush1.msra.mxu0 0.0
        %551 = vmatprep.subr.mxu0 0.0
        %552 = vmatpush1.msra.mxu0 0.0
        %553 = vmatprep.subr.mxu0 0.0
        %554 = vmatpush1.msra.mxu0 0.0
        %555 = vmatprep.subr.mxu0 0.0
        %556 = vmatpush1.msra.mxu0 0.0
        %557 = vmatprep.subr.mxu0 0.0
        %558 = vmatpush1.msra.mxu0 0.0
        %559 = vmatprep.subr.mxu0 0.0
        %560 = vmatpush1.msra.mxu0 0.0
        %561 = vmatprep.subr.mxu0 0.0
        %562 = vmatpush1.msra.mxu0 0.0
        %563 = vmatprep.subr.mxu0 0.0
        %564 = vmatpush1.msra.mxu0 0.0
        %565 = vmatprep.subr.mxu0 0.0
        %566 = vmatpush1.msra.mxu0 0.0
        %567 = vmatprep.subr.mxu0 0.0
        %568 = vmatpush1.msra.mxu0 0.0
        %569 = vmatprep.subr.mxu0 0.0
        %570 = vmatpush1.msra.mxu0 0.0
        %571 = vmatprep.subr.mxu0 0.0
        %572 = vmatpush1.msra.mxu0 0.0
        %573 = vmatprep.subr.mxu0 0.0
        %574 = vmatpush1.msra.mxu0 0.0
        %575 = vmatprep.subr.mxu0 0.0
        %576 = vmatpush1.msra.mxu0 0.0
        %577 = vmatprep.subr.mxu0 0.0
        %578 = vmatpush1.msra.mxu0 0.0
        %579 = vmatprep.subr.mxu0 0.0
        %580 = vmatpush1.msra.mxu0 0.0
        %581 = vmatprep.subr.mxu0 0.0
        %582 = vmatpush1.msra.mxu0 0.0
        %583 = vmatprep.subr.mxu0 0.0
        %584 = vmatpush1.msra.mxu0 0.0
        %585 = vmatprep.mubr.f32.mxu0 0.0
        %v586 = vand.u32 %v216, 4294901760
        %587 = vmatmul.mubr.f32.gmra.mrb[0].mxu0 %v586
        %v588 = vpop.f32.mrb[0].mxu0
        %v589 = vadd.f32 %v342, %v588
        %v590 = vpop.f32.mrb[0].mxu0
        %v591 = vadd.f32 %v344, %v590
        %592 = vmatprep.mubr.f32.mxu0 0.0
        %v593 = vand.u32 %v219, 4294901760
        %594 = vmatmul.mubr.f32.gmra.mrb[0].mxu0 %v593
        %v595 = vpop.f32.mrb[0].mxu0
        %v596 = vadd.f32 %v353, %v595
        %v597 = vpop.f32.mrb[0].mxu0
        %v598 = vadd.f32 %v355, %v597
        %599 = vmatprep.mubr.f32.mxu0 0.0
        %v600 = vand.u32 %v222, 4294901760
        %601 = vmatmul.mubr.f32.gmra.mrb[0].mxu0 %v600
        %v602 = vpop.f32.mrb[0].mxu0
        %v603 = vadd.f32 %v364, %v602
        %v604 = vpop.f32.mrb[0].mxu0
        %v605 = vadd.f32 %v366, %v604
        %606 = vmatprep.mubr.f32.mxu0 0.0
        %v607 = vand.u32 %v225, 4294901760
        %608 = vmatmul.mubr.f32.gmra.mrb[0].mxu0 %v607
        %v609 = vpop.f32.mrb[0].mxu0
        %v610 = vadd.f32 %v375, %v609
        %v611 = vpop.f32.mrb[0].mxu0
        %v612 = vadd.f32 %v377, %v611
        %613 = vmatprep.mubr.f32.mxu0 0.0
        %v614 = vand.u32 %v228, 4294901760
        %615 = vmatmul.mubr.f32.gmra.mrb[0].mxu0 %v614
        %v616 = vpop.f32.mrb[0].mxu0
        %v617 = vadd.f32 %v386, %v616
        %v618 = vpop.f32.mrb[0].mxu0
        %v619 = vadd.f32 %v388, %v618
        %620 = vmatprep.mubr.f32.mxu0 0.0
        %v621 = vand.u32 %v231, 4294901760
        %622 = vmatmul.mubr.f32.gmra.mrb[0].mxu0 %v621
        %v623 = vpop.f32.mrb[0].mxu0
        %v624 = vadd.f32 %v397, %v623
        %v625 = vpop.f32.mrb[0].mxu0
        %v626 = vadd.f32 %v399, %v625
        %627 = vmatprep.mubr.f32.mxu0 0.0
        %v628 = vand.u32 %v234, 4294901760
        %629 = vmatmul.mubr.f32.gmra.mrb[0].mxu0 %v628
        %v630 = vpop.f32.mrb[0].mxu0
        %v631 = vadd.f32 %v408, %v630
        %v632 = vpop.f32.mrb[0].mxu0
        %v633 = vadd.f32 %v410, %v632
        %634 = vmatprep.mubr.f32.mxu0 0.0
        %v635 = vand.u32 %v237, 4294901760
        %636 = vmatmul.mubr.f32.gmra.mrb[0].mxu0 %v635
        %v637 = vpop.f32.mrb[0].mxu0
        %v638 = vadd.f32 %v419, %v637
        %v639 = vpop.f32.mrb[0].mxu0
        %v640 = vadd.f32 %v421, %v639
        %641 = vmatprep.mubr.f32.mxu0 0.0
        %v642 = vand.u32 %v240, 4294901760
        %643 = vmatmul.mubr.f32.gmra.mrb[0].mxu0 %v642
        %v644 = vpop.f32.mrb[0].mxu0
        %v645 = vadd.f32 %v430, %v644
        %v646 = vpop.f32.mrb[0].mxu0
        %v647 = vadd.f32 %v432, %v646
        %648 = vmatprep.mubr.f32.mxu0 0.0
        %v649 = vand.u32 %v243, 4294901760
        %650 = vmatmul.mubr.f32.gmra.mrb[0].mxu0 %v649
        %v651 = vpop.f32.mrb[0].mxu0
        %v652 = vadd.f32 %v441, %v651
        %v653 = vpop.f32.mrb[0].mxu0
        %v654 = vadd.f32 %v443, %v653
        %655 = vmatprep.mubr.f32.mxu0 0.0
        %v656 = vand.u32 %v246, 4294901760
        %657 = vmatmul.mubr.f32.gmra.mrb[0].mxu0 %v656
        %v658 = vpop.f32.mrb[0].mxu0
        %v659 = vadd.f32 %v452, %v658
        %v660 = vpop.f32.mrb[0].mxu0
        %v661 = vadd.f32 %v454, %v660
        %662 = vmatprep.mubr.f32.mxu0 0.0
        %v663 = vand.u32 %v249, 4294901760
        %664 = vmatmul.mubr.f32.gmra.mrb[0].mxu0 %v663
        %v665 = vpop.f32.mrb[0].mxu0
        %v666 = vadd.f32 %v463, %v665
        %v667 = vpop.f32.mrb[0].mxu0
        %v668 = vadd.f32 %v465, %v667
        %669 = vmatprep.mubr.f32.mxu0 0.0
        %v670 = vand.u32 %v252, 4294901760
        %671 = vmatmul.mubr.f32.gmra.mrb[0].mxu0 %v670
        %v672 = vpop.f32.mrb[0].mxu0
        %v673 = vadd.f32 %v474, %v672
        %v674 = vpop.f32.mrb[0].mxu0
        %v675 = vadd.f32 %v476, %v674
        %676 = vmatprep.mubr.f32.mxu0 0.0
        %v677 = vand.u32 %v255, 4294901760
        %678 = vmatmul.mubr.f32.gmra.mrb[0].mxu0 %v677
        %v679 = vpop.f32.mrb[0].mxu0
        %v680 = vadd.f32 %v485, %v679
        %v681 = vpop.f32.mrb[0].mxu0
        %v682 = vadd.f32 %v487, %v681
        %683 = vmatprep.mubr.f32.mxu0 0.0
        %v684 = vand.u32 %v258, 4294901760
        %685 = vmatmul.mubr.f32.gmra.mrb[0].mxu0 %v684
        %v686 = vpop.f32.mrb[0].mxu0
        %v687 = vadd.f32 %v496, %v686
        %v688 = vpop.f32.mrb[0].mxu0
        %v689 = vadd.f32 %v498, %v688
        %690 = vmatprep.mubr.f32.mxu0 0.0
        %v691 = vand.u32 %v261, 4294901760
        %692 = vmatmul.mubr.f32.gmra.mrb[0].mxu0 %v691
        %v693 = vpop.f32.mrb[0].mxu0
        %v694 = vadd.f32 %v507, %v693
        %v695 = vpop.f32.mrb[0].mxu0
        %v696 = vadd.f32 %v509, %v695
        %697 = vdwg.mxu0
        %v698 = vand.u32 %v266, 4294901760
        %v699 = vsub.f32 %v266, %v698
        %700 = vmatprep.subr.mxu0 %v699
        %v701 = vand.u32 %v264, 4294901760
        %v702 = vsub.f32 %v264, %v701
        %703 = vmatpush1.msra.mxu0 %v702
        %704 = vmatprep.subr.mxu0 0.0
        %705 = vmatpush1.msra.mxu0 0.0
        %706 = vmatprep.subr.mxu0 0.0
        %707 = vmatpush1.msra.mxu0 0.0
        %708 = vmatprep.subr.mxu0 0.0
        %709 = vmatpush1.msra.mxu0 0.0
        %710 = vmatprep.subr.mxu0 0.0
        %711 = vmatpush1.msra.mxu0 0.0
        %712 = vmatprep.subr.mxu0 0.0
        %713 = vmatpush1.msra.mxu0 0.0
        %714 = vmatprep.subr.mxu0 0.0
        %715 = vmatpush1.msra.mxu0 0.0
        %716 = vmatprep.subr.mxu0 0.0
        %717 = vmatpush1.msra.mxu0 0.0
        %718 = vmatprep.subr.mxu0 0.0
        %719 = vmatpush1.msra.mxu0 0.0
        %720 = vmatprep.subr.mxu0 0.0
        %721 = vmatpush1.msra.mxu0 0.0
        %722 = vmatprep.subr.mxu0 0.0
        %723 = vmatpush1.msra.mxu0 0.0
        %724 = vmatprep.subr.mxu0 0.0
        %725 = vmatpush1.msra.mxu0 0.0
        %726 = vmatprep.subr.mxu0 0.0
        %727 = vmatpush1.msra.mxu0 0.0
        %728 = vmatprep.subr.mxu0 0.0
        %729 = vmatpush1.msra.mxu0 0.0
        %730 = vmatprep.subr.mxu0 0.0
        %731 = vmatpush1.msra.mxu0 0.0
        %732 = vmatprep.subr.mxu0 0.0
        %733 = vmatpush1.msra.mxu0 0.0
        %734 = vmatprep.subr.mxu0 0.0
        %735 = vmatpush1.msra.mxu0 0.0
        %736 = vmatprep.subr.mxu0 0.0
        %737 = vmatpush1.msra.mxu0 0.0
        %738 = vmatprep.subr.mxu0 0.0
        %739 = vmatpush1.msra.mxu0 0.0
        %740 = vmatprep.subr.mxu0 0.0
        %741 = vmatpush1.msra.mxu0 0.0
        %742 = vmatprep.subr.mxu0 0.0
        %743 = vmatpush1.msra.mxu0 0.0
        %744 = vmatprep.subr.mxu0 0.0
        %745 = vmatpush1.msra.mxu0 0.0
        %746 = vmatprep.subr.mxu0 0.0
        %747 = vmatpush1.msra.mxu0 0.0
        %748 = vmatprep.subr.mxu0 0.0
        %749 = vmatpush1.msra.mxu0 0.0
        %750 = vmatprep.subr.mxu0 0.0
        %751 = vmatpush1.msra.mxu0 0.0
        %752 = vmatprep.subr.mxu0 0.0
        %753 = vmatpush1.msra.mxu0 0.0
        %754 = vmatprep.subr.mxu0 0.0
        %755 = vmatpush1.msra.mxu0 0.0
        %756 = vmatprep.subr.mxu0 0.0
        %757 = vmatpush1.msra.mxu0 0.0
        %758 = vmatprep.subr.mxu0 0.0
        %759 = vmatpush1.msra.mxu0 0.0
        %760 = vmatprep.subr.mxu0 0.0
        %761 = vmatpush1.msra.mxu0 0.0
        %762 = vmatprep.subr.mxu0 0.0
        %763 = vmatpush1.msra.mxu0 0.0
        %764 = vmatprep.subr.mxu0 0.0
        %765 = vmatpush1.msra.mxu0 0.0
        %766 = vmatprep.mubr.f32.mxu0 0.0
        %v767 = vand.u32 %v216, 4294901760
        %v768 = vsub.f32 %v216, %v767
        %769 = vmatmul.mubr.f32.gmra.mrb[0].mxu0 %v768
        %v770 = vpop.f32.mrb[0].mxu0
        %v771 = vadd.f32 %v589, %v770
        %v772 = vpop.f32.mrb[0].mxu0
        %v773 = vadd.f32 %v591, %v772
        %774 = vmatprep.mubr.f32.mxu0 0.0
        %v775 = vand.u32 %v219, 4294901760
        %v776 = vsub.f32 %v219, %v775
        %777 = vmatmul.mubr.f32.gmra.mrb[0].mxu0 %v776
        %v778 = vpop.f32.mrb[0].mxu0
        %v779 = vadd.f32 %v596, %v778
        %v780 = vpop.f32.mrb[0].mxu0
        %v781 = vadd.f32 %v598, %v780
        %782 = vmatprep.mubr.f32.mxu0 0.0
        %v783 = vand.u32 %v222, 4294901760
        %v784 = vsub.f32 %v222, %v783
        %785 = vmatmul.mubr.f32.gmra.mrb[0].mxu0 %v784
        %v786 = vpop.f32.mrb[0].mxu0
        %v787 = vadd.f32 %v603, %v786
        %v788 = vpop.f32.mrb[0].mxu0
        %v789 = vadd.f32 %v605, %v788
        %790 = vmatprep.mubr.f32.mxu0 0.0
        %v791 = vand.u32 %v225, 4294901760
        %v792 = vsub.f32 %v225, %v791
        %793 = vmatmul.mubr.f32.gmra.mrb[0].mxu0 %v792
        %v794 = vpop.f32.mrb[0].mxu0
        %v795 = vadd.f32 %v610, %v794
        %v796 = vpop.f32.mrb[0].mxu0
        %v797 = vadd.f32 %v612, %v796
        %798 = vmatprep.mubr.f32.mxu0 0.0
        %v799 = vand.u32 %v228, 4294901760
        %v800 = vsub.f32 %v228, %v799
        %801 = vmatmul.mubr.f32.gmra.mrb[0].mxu0 %v800
        %v802 = vpop.f32.mrb[0].mxu0
        %v803 = vadd.f32 %v617, %v802
        %v804 = vpop.f32.mrb[0].mxu0
        %v805 = vadd.f32 %v619, %v804
        %806 = vmatprep.mubr.f32.mxu0 0.0
        %v807 = vand.u32 %v231, 4294901760
        %v808 = vsub.f32 %v231, %v807
        %809 = vmatmul.mubr.f32.gmra.mrb[0].mxu0 %v808
        %v810 = vpop.f32.mrb[0].mxu0
        %v811 = vadd.f32 %v624, %v810
        %v812 = vpop.f32.mrb[0].mxu0
        %v813 = vadd.f32 %v626, %v812
        %814 = vmatprep.mubr.f32.mxu0 0.0
        %v815 = vand.u32 %v234, 4294901760
        %v816 = vsub.f32 %v234, %v815
        %817 = vmatmul.mubr.f32.gmra.mrb[0].mxu0 %v816
        %v818 = vpop.f32.mrb[0].mxu0
        %v819 = vadd.f32 %v631, %v818
        %v820 = vpop.f32.mrb[0].mxu0
        %v821 = vadd.f32 %v633, %v820
        %822 = vmatprep.mubr.f32.mxu0 0.0
        %v823 = vand.u32 %v237, 4294901760
        %v824 = vsub.f32 %v237, %v823
        %825 = vmatmul.mubr.f32.gmra.mrb[0].mxu0 %v824
        %v826 = vpop.f32.mrb[0].mxu0
        %v827 = vadd.f32 %v638, %v826
        %v828 = vpop.f32.mrb[0].mxu0
        %v829 = vadd.f32 %v640, %v828
        %830 = vmatprep.mubr.f32.mxu0 0.0
        %v831 = vand.u32 %v240, 4294901760
        %v832 = vsub.f32 %v240, %v831
        %833 = vmatmul.mubr.f32.gmra.mrb[0].mxu0 %v832
        %v834 = vpop.f32.mrb[0].mxu0
        %v835 = vadd.f32 %v645, %v834
        %v836 = vpop.f32.mrb[0].mxu0
        %v837 = vadd.f32 %v647, %v836
        %838 = vmatprep.mubr.f32.mxu0 0.0
        %v839 = vand.u32 %v243, 4294901760
        %v840 = vsub.f32 %v243, %v839
        %841 = vmatmul.mubr.f32.gmra.mrb[0].mxu0 %v840
        %v842 = vpop.f32.mrb[0].mxu0
        %v843 = vadd.f32 %v652, %v842
        %v844 = vpop.f32.mrb[0].mxu0
        %v845 = vadd.f32 %v654, %v844
        %846 = vmatprep.mubr.f32.mxu0 0.0
        %v847 = vand.u32 %v246, 4294901760
        %v848 = vsub.f32 %v246, %v847
        %849 = vmatmul.mubr.f32.gmra.mrb[0].mxu0 %v848
        %v850 = vpop.f32.mrb[0].mxu0
        %v851 = vadd.f32 %v659, %v850
        %v852 = vpop.f32.mrb[0].mxu0
        %v853 = vadd.f32 %v661, %v852
        %854 = vmatprep.mubr.f32.mxu0 0.0
        %v855 = vand.u32 %v249, 4294901760
        %v856 = vsub.f32 %v249, %v855
        %857 = vmatmul.mubr.f32.gmra.mrb[0].mxu0 %v856
        %v858 = vpop.f32.mrb[0].mxu0
        %v859 = vadd.f32 %v666, %v858
        %v860 = vpop.f32.mrb[0].mxu0
        %v861 = vadd.f32 %v668, %v860
        %862 = vmatprep.mubr.f32.mxu0 0.0
        %v863 = vand.u32 %v252, 4294901760
        %v864 = vsub.f32 %v252, %v863
        %865 = vmatmul.mubr.f32.gmra.mrb[0].mxu0 %v864
        %v866 = vpop.f32.mrb[0].mxu0
        %v867 = vadd.f32 %v673, %v866
        %v868 = vpop.f32.mrb[0].mxu0
        %v869 = vadd.f32 %v675, %v868
        %870 = vmatprep.mubr.f32.mxu0 0.0
        %v871 = vand.u32 %v255, 4294901760
        %v872 = vsub.f32 %v255, %v871
        %873 = vmatmul.mubr.f32.gmra.mrb[0].mxu0 %v872
        %v874 = vpop.f32.mrb[0].mxu0
        %v875 = vadd.f32 %v680, %v874
        %v876 = vpop.f32.mrb[0].mxu0
        %v877 = vadd.f32 %v682, %v876
        %878 = vmatprep.mubr.f32.mxu0 0.0
        %v879 = vand.u32 %v258, 4294901760
        %v880 = vsub.f32 %v258, %v879
        %881 = vmatmul.mubr.f32.gmra.mrb[0].mxu0 %v880
        %v882 = vpop.f32.mrb[0].mxu0
        %v883 = vadd.f32 %v687, %v882
        %v884 = vpop.f32.mrb[0].mxu0
        %v885 = vadd.f32 %v689, %v884
        %886 = vmatprep.mubr.f32.mxu0 0.0
        %v887 = vand.u32 %v261, 4294901760
        %v888 = vsub.f32 %v261, %v887
        %889 = vmatmul.mubr.f32.gmra.mrb[0].mxu0 %v888
        %v890 = vpop.f32.mrb[0].mxu0
        %v891 = vadd.f32 %v694, %v890
        %v892 = vpop.f32.mrb[0].mxu0
        %v893 = vadd.f32 %v696, %v892
        %894 = vdwg.mxu0
        %v895 = vand.u32 %v266, 4294901760
        %896 = vmatprep.subr.mxu0 %v895
        %v897 = vand.u32 %v264, 4294901760
        %898 = vmatpush1.msra.mxu0 %v897
        %899 = vmatprep.subr.mxu0 0.0
        %900 = vmatpush1.msra.mxu0 0.0
        %901 = vmatprep.subr.mxu0 0.0
        %902 = vmatpush1.msra.mxu0 0.0
        %903 = vmatprep.subr.mxu0 0.0
        %904 = vmatpush1.msra.mxu0 0.0
        %905 = vmatprep.subr.mxu0 0.0
        %906 = vmatpush1.msra.mxu0 0.0
        %907 = vmatprep.subr.mxu0 0.0
        %908 = vmatpush1.msra.mxu0 0.0
        %909 = vmatprep.subr.mxu0 0.0
        %910 = vmatpush1.msra.mxu0 0.0
        %911 = vmatprep.subr.mxu0 0.0
        %912 = vmatpush1.msra.mxu0 0.0
        %913 = vmatprep.subr.mxu0 0.0
        %914 = vmatpush1.msra.mxu0 0.0
        %915 = vmatprep.subr.mxu0 0.0
        %916 = vmatpush1.msra.mxu0 0.0
        %917 = vmatprep.subr.mxu0 0.0
        %918 = vmatpush1.msra.mxu0 0.0
        %919 = vmatprep.subr.mxu0 0.0
        %920 = vmatpush1.msra.mxu0 0.0
        %921 = vmatprep.subr.mxu0 0.0
        %922 = vmatpush1.msra.mxu0 0.0
        %923 = vmatprep.subr.mxu0 0.0
        %924 = vmatpush1.msra.mxu0 0.0
        %925 = vmatprep.subr.mxu0 0.0
        %926 = vmatpush1.msra.mxu0 0.0
        %927 = vmatprep.subr.mxu0 0.0
        %928 = vmatpush1.msra.mxu0 0.0
        %929 = vmatprep.subr.mxu0 0.0
        %930 = vmatpush1.msra.mxu0 0.0
        %931 = vmatprep.subr.mxu0 0.0
        %932 = vmatpush1.msra.mxu0 0.0
        %933 = vmatprep.subr.mxu0 0.0
        %934 = vmatpush1.msra.mxu0 0.0
        %935 = vmatprep.subr.mxu0 0.0
        %936 = vmatpush1.msra.mxu0 0.0
        %937 = vmatprep.subr.mxu0 0.0
        %938 = vmatpush1.msra.mxu0 0.0
        %939 = vmatprep.subr.mxu0 0.0
        %940 = vmatpush1.msra.mxu0 0.0
        %941 = vmatprep.subr.mxu0 0.0
        %942 = vmatpush1.msra.mxu0 0.0
        %943 = vmatprep.subr.mxu0 0.0
        %944 = vmatpush1.msra.mxu0 0.0
        %945 = vmatprep.subr.mxu0 0.0
        %946 = vmatpush1.msra.mxu0 0.0
        %947 = vmatprep.subr.mxu0 0.0
        %948 = vmatpush1.msra.mxu0 0.0
        %949 = vmatprep.subr.mxu0 0.0
        %950 = vmatpush1.msra.mxu0 0.0
        %951 = vmatprep.subr.mxu0 0.0
        %952 = vmatpush1.msra.mxu0 0.0
        %953 = vmatprep.subr.mxu0 0.0
        %954 = vmatpush1.msra.mxu0 0.0
        %955 = vmatprep.subr.mxu0 0.0
        %956 = vmatpush1.msra.mxu0 0.0
        %957 = vmatprep.subr.mxu0 0.0
        %958 = vmatpush1.msra.mxu0 0.0
        %959 = vmatprep.subr.mxu0 0.0
        %960 = vmatpush1.msra.mxu0 0.0
        %961 = vmatprep.mubr.f32.mxu0 0.0
        %v962 = vand.u32 %v216, 4294901760
        %v963 = vsub.f32 %v216, %v962
        %v964 = vand.u32 %v963, 4294901760
        %965 = vmatmul.mubr.f32.gmra.mrb[0].mxu0 %v964
        %v966 = vpop.f32.mrb[0].mxu0
        %v967 = vadd.f32 %v771, %v966
        %v968 = vpop.f32.mrb[0].mxu0
        %v969 = vadd.f32 %v773, %v968
        %970 = vmatprep.mubr.f32.mxu0 0.0
        %v971 = vand.u32 %v219, 4294901760
        %v972 = vsub.f32 %v219, %v971
        %v973 = vand.u32 %v972, 4294901760
        %974 = vmatmul.mubr.f32.gmra.mrb[0].mxu0 %v973
        %v975 = vpop.f32.mrb[0].mxu0
        %v976 = vadd.f32 %v779, %v975
        %v977 = vpop.f32.mrb[0].mxu0
        %v978 = vadd.f32 %v781, %v977
        %979 = vmatprep.mubr.f32.mxu0 0.0
        %v980 = vand.u32 %v222, 4294901760
        %v981 = vsub.f32 %v222, %v980
        %v982 = vand.u32 %v981, 4294901760
        %983 = vmatmul.mubr.f32.gmra.mrb[0].mxu0 %v982
        %v984 = vpop.f32.mrb[0].mxu0
        %v985 = vadd.f32 %v787, %v984
        %v986 = vpop.f32.mrb[0].mxu0
        %v987 = vadd.f32 %v789, %v986
        %988 = vmatprep.mubr.f32.mxu0 0.0
        %v989 = vand.u32 %v225, 4294901760
        %v990 = vsub.f32 %v225, %v989
        %v991 = vand.u32 %v990, 4294901760
        %992 = vmatmul.mubr.f32.gmra.mrb[0].mxu0 %v991
        %v993 = vpop.f32.mrb[0].mxu0
        %v994 = vadd.f32 %v795, %v993
        %v995 = vpop.f32.mrb[0].mxu0
        %v996 = vadd.f32 %v797, %v995
        %997 = vmatprep.mubr.f32.mxu0 0.0
        %v998 = vand.u32 %v228, 4294901760
        %v999 = vsub.f32 %v228, %v998
        %v1000 = vand.u32 %v999, 4294901760
        %1001 = vmatmul.mubr.f32.gmra.mrb[0].mxu0 %v1000
        %v1002 = vpop.f32.mrb[0].mxu0
        %v1003 = vadd.f32 %v803, %v1002
        %v1004 = vpop.f32.mrb[0].mxu0
        %v1005 = vadd.f32 %v805, %v1004
        %1006 = vmatprep.mubr.f32.mxu0 0.0
        %v1007 = vand.u32 %v231, 4294901760
        %v1008 = vsub.f32 %v231, %v1007
        %v1009 = vand.u32 %v1008, 4294901760
        %1010 = vmatmul.mubr.f32.gmra.mrb[0].mxu0 %v1009
        %v1011 = vpop.f32.mrb[0].mxu0
        %v1012 = vadd.f32 %v811, %v1011
        %v1013 = vpop.f32.mrb[0].mxu0
        %v1014 = vadd.f32 %v813, %v1013
        %1015 = vmatprep.mubr.f32.mxu0 0.0
        %v1016 = vand.u32 %v234, 4294901760
        %v1017 = vsub.f32 %v234, %v1016
        %v1018 = vand.u32 %v1017, 4294901760
        %1019 = vmatmul.mubr.f32.gmra.mrb[0].mxu0 %v1018
        %v1020 = vpop.f32.mrb[0].mxu0
        %v1021 = vadd.f32 %v819, %v1020
        %v1022 = vpop.f32.mrb[0].mxu0
        %v1023 = vadd.f32 %v821, %v1022
        %1024 = vmatprep.mubr.f32.mxu0 0.0
        %v1025 = vand.u32 %v237, 4294901760
        %v1026 = vsub.f32 %v237, %v1025
        %v1027 = vand.u32 %v1026, 4294901760
        %1028 = vmatmul.mubr.f32.gmra.mrb[0].mxu0 %v1027
        %v1029 = vpop.f32.mrb[0].mxu0
        %v1030 = vadd.f32 %v827, %v1029
        %v1031 = vpop.f32.mrb[0].mxu0
        %v1032 = vadd.f32 %v829, %v1031
        %1033 = vmatprep.mubr.f32.mxu0 0.0
        %v1034 = vand.u32 %v240, 4294901760
        %v1035 = vsub.f32 %v240, %v1034
        %v1036 = vand.u32 %v1035, 4294901760
        %1037 = vmatmul.mubr.f32.gmra.mrb[0].mxu0 %v1036
        %v1038 = vpop.f32.mrb[0].mxu0
        %v1039 = vadd.f32 %v835, %v1038
        %v1040 = vpop.f32.mrb[0].mxu0
        %v1041 = vadd.f32 %v837, %v1040
        %1042 = vmatprep.mubr.f32.mxu0 0.0
        %v1043 = vand.u32 %v243, 4294901760
        %v1044 = vsub.f32 %v243, %v1043
        %v1045 = vand.u32 %v1044, 4294901760
        %1046 = vmatmul.mubr.f32.gmra.mrb[0].mxu0 %v1045
        %v1047 = vpop.f32.mrb[0].mxu0
        %v1048 = vadd.f32 %v843, %v1047
        %v1049 = vpop.f32.mrb[0].mxu0
        %v1050 = vadd.f32 %v845, %v1049
        %1051 = vmatprep.mubr.f32.mxu0 0.0
        %v1052 = vand.u32 %v246, 4294901760
        %v1053 = vsub.f32 %v246, %v1052
        %v1054 = vand.u32 %v1053, 4294901760
        %1055 = vmatmul.mubr.f32.gmra.mrb[0].mxu0 %v1054
        %v1056 = vpop.f32.mrb[0].mxu0
        %v1057 = vadd.f32 %v851, %v1056
        %v1058 = vpop.f32.mrb[0].mxu0
        %v1059 = vadd.f32 %v853, %v1058
        %1060 = vmatprep.mubr.f32.mxu0 0.0
        %v1061 = vand.u32 %v249, 4294901760
        %v1062 = vsub.f32 %v249, %v1061
        %v1063 = vand.u32 %v1062, 4294901760
        %1064 = vmatmul.mubr.f32.gmra.mrb[0].mxu0 %v1063
        %v1065 = vpop.f32.mrb[0].mxu0
        %v1066 = vadd.f32 %v859, %v1065
        %v1067 = vpop.f32.mrb[0].mxu0
        %v1068 = vadd.f32 %v861, %v1067
        %1069 = vmatprep.mubr.f32.mxu0 0.0
        %v1070 = vand.u32 %v252, 4294901760
        %v1071 = vsub.f32 %v252, %v1070
        %v1072 = vand.u32 %v1071, 4294901760
        %1073 = vmatmul.mubr.f32.gmra.mrb[0].mxu0 %v1072
        %v1074 = vpop.f32.mrb[0].mxu0
        %v1075 = vadd.f32 %v867, %v1074
        %v1076 = vpop.f32.mrb[0].mxu0
        %v1077 = vadd.f32 %v869, %v1076
        %1078 = vmatprep.mubr.f32.mxu0 0.0
        %v1079 = vand.u32 %v255, 4294901760
        %v1080 = vsub.f32 %v255, %v1079
        %v1081 = vand.u32 %v1080, 4294901760
        %1082 = vmatmul.mubr.f32.gmra.mrb[0].mxu0 %v1081
        %v1083 = vpop.f32.mrb[0].mxu0
        %v1084 = vadd.f32 %v875, %v1083
        %v1085 = vpop.f32.mrb[0].mxu0
        %v1086 = vadd.f32 %v877, %v1085
        %1087 = vmatprep.mubr.f32.mxu0 0.0
        %v1088 = vand.u32 %v258, 4294901760
        %v1089 = vsub.f32 %v258, %v1088
        %v1090 = vand.u32 %v1089, 4294901760
        %1091 = vmatmul.mubr.f32.gmra.mrb[0].mxu0 %v1090
        %v1092 = vpop.f32.mrb[0].mxu0
        %v1093 = vadd.f32 %v883, %v1092
        %v1094 = vpop.f32.mrb[0].mxu0
        %v1095 = vadd.f32 %v885, %v1094
        %1096 = vmatprep.mubr.f32.mxu0 0.0
        %v1097 = vand.u32 %v261, 4294901760
        %v1098 = vsub.f32 %v261, %v1097
        %v1099 = vand.u32 %v1098, 4294901760
        %1100 = vmatmul.mubr.f32.gmra.mrb[0].mxu0 %v1099
        %v1101 = vpop.f32.mrb[0].mxu0
        %v1102 = vadd.f32 %v891, %v1101
        %v1103 = vpop.f32.mrb[0].mxu0
        %v1104 = vadd.f32 %v893, %v1103
        %1105 = vdwg.mxu0
        %v1106 = vand.u32 %v266, 4294901760
        %v1107 = vsub.f32 %v266, %v1106
        %v1108 = vand.u32 %v1107, 4294901760
        %1109 = vmatprep.subr.mxu0 %v1108
        %v1110 = vand.u32 %v264, 4294901760
        %v1111 = vsub.f32 %v264, %v1110
        %v1112 = vand.u32 %v1111, 4294901760
        %1113 = vmatpush1.msra.mxu0 %v1112
        %1114 = vmatprep.subr.mxu0 0.0
        %1115 = vmatpush1.msra.mxu0 0.0
        %1116 = vmatprep.subr.mxu0 0.0
        %1117 = vmatpush1.msra.mxu0 0.0
        %1118 = vmatprep.subr.mxu0 0.0
        %1119 = vmatpush1.msra.mxu0 0.0
        %1120 = vmatprep.subr.mxu0 0.0
        %1121 = vmatpush1.msra.mxu0 0.0
        %1122 = vmatprep.subr.mxu0 0.0
        %1123 = vmatpush1.msra.mxu0 0.0
        %1124 = vmatprep.subr.mxu0 0.0
        %1125 = vmatpush1.msra.mxu0 0.0
        %1126 = vmatprep.subr.mxu0 0.0
        %1127 = vmatpush1.msra.mxu0 0.0
        %1128 = vmatprep.subr.mxu0 0.0
        %1129 = vmatpush1.msra.mxu0 0.0
        %1130 = vmatprep.subr.mxu0 0.0
        %1131 = vmatpush1.msra.mxu0 0.0
        %1132 = vmatprep.subr.mxu0 0.0
        %1133 = vmatpush1.msra.mxu0 0.0
        %1134 = vmatprep.subr.mxu0 0.0
        %1135 = vmatpush1.msra.mxu0 0.0
        %1136 = vmatprep.subr.mxu0 0.0
        %1137 = vmatpush1.msra.mxu0 0.0
        %1138 = vmatprep.subr.mxu0 0.0
        %1139 = vmatpush1.msra.mxu0 0.0
        %1140 = vmatprep.subr.mxu0 0.0
        %1141 = vmatpush1.msra.mxu0 0.0
        %1142 = vmatprep.subr.mxu0 0.0
        %1143 = vmatpush1.msra.mxu0 0.0
        %1144 = vmatprep.subr.mxu0 0.0
        %1145 = vmatpush1.msra.mxu0 0.0
        %1146 = vmatprep.subr.mxu0 0.0
        %1147 = vmatpush1.msra.mxu0 0.0
        %1148 = vmatprep.subr.mxu0 0.0
        %1149 = vmatpush1.msra.mxu0 0.0
        %1150 = vmatprep.subr.mxu0 0.0
        %1151 = vmatpush1.msra.mxu0 0.0
        %1152 = vmatprep.subr.mxu0 0.0
        %1153 = vmatpush1.msra.mxu0 0.0
        %1154 = vmatprep.subr.mxu0 0.0
        %1155 = vmatpush1.msra.mxu0 0.0
        %1156 = vmatprep.subr.mxu0 0.0
        %1157 = vmatpush1.msra.mxu0 0.0
        %1158 = vmatprep.subr.mxu0 0.0
        %1159 = vmatpush1.msra.mxu0 0.0
        %1160 = vmatprep.subr.mxu0 0.0
        %1161 = vmatpush1.msra.mxu0 0.0
        %1162 = vmatprep.subr.mxu0 0.0
        %1163 = vmatpush1.msra.mxu0 0.0
        %1164 = vmatprep.subr.mxu0 0.0
        %1165 = vmatpush1.msra.mxu0 0.0
        %1166 = vmatprep.subr.mxu0 0.0
        %1167 = vmatpush1.msra.mxu0 0.0
        %1168 = vmatprep.subr.mxu0 0.0
        %1169 = vmatpush1.msra.mxu0 0.0
        %1170 = vmatprep.subr.mxu0 0.0
        %1171 = vmatpush1.msra.mxu0 0.0
        %1172 = vmatprep.subr.mxu0 0.0
        %1173 = vmatpush1.msra.mxu0 0.0
        %1174 = vmatprep.subr.mxu0 0.0
        %1175 = vmatpush1.msra.mxu0 0.0
        %1176 = vmatprep.mubr.f32.mxu0 0.0
        %v1177 = vand.u32 %v216, 4294901760
        %1178 = vmatmul.mubr.f32.gmra.mrb[0].mxu0 %v1177
        %v1179 = vpop.f32.mrb[0].mxu0
        %v1180 = vadd.f32 %v967, %v1179
        %v1181 = vpop.f32.mrb[0].mxu0
        %v1182 = vadd.f32 %v969, %v1181
        %1183 = vmatprep.mubr.f32.mxu0 0.0
        %v1184 = vand.u32 %v219, 4294901760
        %1185 = vmatmul.mubr.f32.gmra.mrb[0].mxu0 %v1184
        %v1186 = vpop.f32.mrb[0].mxu0
        %v1187 = vadd.f32 %v976, %v1186
        %v1188 = vpop.f32.mrb[0].mxu0
        %v1189 = vadd.f32 %v978, %v1188
        %1190 = vmatprep.mubr.f32.mxu0 0.0
        %v1191 = vand.u32 %v222, 4294901760
        %1192 = vmatmul.mubr.f32.gmra.mrb[0].mxu0 %v1191
        %v1193 = vpop.f32.mrb[0].mxu0
        %v1194 = vadd.f32 %v985, %v1193
        %v1195 = vpop.f32.mrb[0].mxu0
        %v1196 = vadd.f32 %v987, %v1195
        %1197 = vmatprep.mubr.f32.mxu0 0.0
        %v1198 = vand.u32 %v225, 4294901760
        %1199 = vmatmul.mubr.f32.gmra.mrb[0].mxu0 %v1198
        %v1200 = vpop.f32.mrb[0].mxu0
        %v1201 = vadd.f32 %v994, %v1200
        %v1202 = vpop.f32.mrb[0].mxu0
        %v1203 = vadd.f32 %v996, %v1202
        %1204 = vmatprep.mubr.f32.mxu0 0.0
        %v1205 = vand.u32 %v228, 4294901760
        %1206 = vmatmul.mubr.f32.gmra.mrb[0].mxu0 %v1205
        %v1207 = vpop.f32.mrb[0].mxu0
        %v1208 = vadd.f32 %v1003, %v1207
        %v1209 = vpop.f32.mrb[0].mxu0
        %v1210 = vadd.f32 %v1005, %v1209
        %1211 = vmatprep.mubr.f32.mxu0 0.0
        %v1212 = vand.u32 %v231, 4294901760
        %1213 = vmatmul.mubr.f32.gmra.mrb[0].mxu0 %v1212
        %v1214 = vpop.f32.mrb[0].mxu0
        %v1215 = vadd.f32 %v1012, %v1214
        %v1216 = vpop.f32.mrb[0].mxu0
        %v1217 = vadd.f32 %v1014, %v1216
        %1218 = vmatprep.mubr.f32.mxu0 0.0
        %v1219 = vand.u32 %v234, 4294901760
        %1220 = vmatmul.mubr.f32.gmra.mrb[0].mxu0 %v1219
        %v1221 = vpop.f32.mrb[0].mxu0
        %v1222 = vadd.f32 %v1021, %v1221
        %v1223 = vpop.f32.mrb[0].mxu0
        %v1224 = vadd.f32 %v1023, %v1223
        %1225 = vmatprep.mubr.f32.mxu0 0.0
        %v1226 = vand.u32 %v237, 4294901760
        %1227 = vmatmul.mubr.f32.gmra.mrb[0].mxu0 %v1226
        %v1228 = vpop.f32.mrb[0].mxu0
        %v1229 = vadd.f32 %v1030, %v1228
        %v1230 = vpop.f32.mrb[0].mxu0
        %v1231 = vadd.f32 %v1032, %v1230
        %1232 = vmatprep.mubr.f32.mxu0 0.0
        %v1233 = vand.u32 %v240, 4294901760
        %1234 = vmatmul.mubr.f32.gmra.mrb[0].mxu0 %v1233
        %v1235 = vpop.f32.mrb[0].mxu0
        %v1236 = vadd.f32 %v1039, %v1235
        %v1237 = vpop.f32.mrb[0].mxu0
        %v1238 = vadd.f32 %v1041, %v1237
        %1239 = vmatprep.mubr.f32.mxu0 0.0
        %v1240 = vand.u32 %v243, 4294901760
        %1241 = vmatmul.mubr.f32.gmra.mrb[0].mxu0 %v1240
        %v1242 = vpop.f32.mrb[0].mxu0
        %v1243 = vadd.f32 %v1048, %v1242
        %v1244 = vpop.f32.mrb[0].mxu0
        %v1245 = vadd.f32 %v1050, %v1244
        %1246 = vmatprep.mubr.f32.mxu0 0.0
        %v1247 = vand.u32 %v246, 4294901760
        %1248 = vmatmul.mubr.f32.gmra.mrb[0].mxu0 %v1247
        %v1249 = vpop.f32.mrb[0].mxu0
        %v1250 = vadd.f32 %v1057, %v1249
        %v1251 = vpop.f32.mrb[0].mxu0
        %v1252 = vadd.f32 %v1059, %v1251
        %1253 = vmatprep.mubr.f32.mxu0 0.0
        %v1254 = vand.u32 %v249, 4294901760
        %1255 = vmatmul.mubr.f32.gmra.mrb[0].mxu0 %v1254
        %v1256 = vpop.f32.mrb[0].mxu0
        %v1257 = vadd.f32 %v1066, %v1256
        %v1258 = vpop.f32.mrb[0].mxu0
        %v1259 = vadd.f32 %v1068, %v1258
        %1260 = vmatprep.mubr.f32.mxu0 0.0
        %v1261 = vand.u32 %v252, 4294901760
        %1262 = vmatmul.mubr.f32.gmra.mrb[0].mxu0 %v1261
        %v1263 = vpop.f32.mrb[0].mxu0
        %v1264 = vadd.f32 %v1075, %v1263
        %v1265 = vpop.f32.mrb[0].mxu0
        %v1266 = vadd.f32 %v1077, %v1265
        %1267 = vmatprep.mubr.f32.mxu0 0.0
        %v1268 = vand.u32 %v255, 4294901760
        %1269 = vmatmul.mubr.f32.gmra.mrb[0].mxu0 %v1268
        %v1270 = vpop.f32.mrb[0].mxu0
        %v1271 = vadd.f32 %v1084, %v1270
        %v1272 = vpop.f32.mrb[0].mxu0
        %v1273 = vadd.f32 %v1086, %v1272
        %1274 = vmatprep.mubr.f32.mxu0 0.0
        %v1275 = vand.u32 %v258, 4294901760
        %1276 = vmatmul.mubr.f32.gmra.mrb[0].mxu0 %v1275
        %v1277 = vpop.f32.mrb[0].mxu0
        %v1278 = vadd.f32 %v1093, %v1277
        %v1279 = vpop.f32.mrb[0].mxu0
        %v1280 = vadd.f32 %v1095, %v1279
        %1281 = vmatprep.mubr.f32.mxu0 0.0
        %v1282 = vand.u32 %v261, 4294901760
        %1283 = vmatmul.mubr.f32.gmra.mrb[0].mxu0 %v1282
        %v1284 = vpop.f32.mrb[0].mxu0
        %v1285 = vadd.f32 %v1102, %v1284
        %v1286 = vpop.f32.mrb[0].mxu0
        %v1287 = vadd.f32 %v1104, %v1286
        %1288 = vdwg.mxu0
        %v1289 = vand.u32 %v266, 4294901760
        %1290 = vmatprep.subr.mxu0 %v1289
        %v1291 = vand.u32 %v264, 4294901760
        %1292 = vmatpush1.msra.mxu0 %v1291
        %1293 = vmatprep.subr.mxu0 0.0
        %1294 = vmatpush1.msra.mxu0 0.0
        %1295 = vmatprep.subr.mxu0 0.0
        %1296 = vmatpush1.msra.mxu0 0.0
        %1297 = vmatprep.subr.mxu0 0.0
        %1298 = vmatpush1.msra.mxu0 0.0
        %1299 = vmatprep.subr.mxu0 0.0
        %1300 = vmatpush1.msra.mxu0 0.0
        %1301 = vmatprep.subr.mxu0 0.0
        %1302 = vmatpush1.msra.mxu0 0.0
        %1303 = vmatprep.subr.mxu0 0.0
        %1304 = vmatpush1.msra.mxu0 0.0
        %1305 = vmatprep.subr.mxu0 0.0
        %1306 = vmatpush1.msra.mxu0 0.0
        %1307 = vmatprep.subr.mxu0 0.0
        %1308 = vmatpush1.msra.mxu0 0.0
        %1309 = vmatprep.subr.mxu0 0.0
        %1310 = vmatpush1.msra.mxu0 0.0
        %1311 = vmatprep.subr.mxu0 0.0
        %1312 = vmatpush1.msra.mxu0 0.0
        %1313 = vmatprep.subr.mxu0 0.0
        %1314 = vmatpush1.msra.mxu0 0.0
        %1315 = vmatprep.subr.mxu0 0.0
        %1316 = vmatpush1.msra.mxu0 0.0
        %1317 = vmatprep.subr.mxu0 0.0
        %1318 = vmatpush1.msra.mxu0 0.0
        %1319 = vmatprep.subr.mxu0 0.0
        %1320 = vmatpush1.msra.mxu0 0.0
        %1321 = vmatprep.subr.mxu0 0.0
        %1322 = vmatpush1.msra.mxu0 0.0
        %1323 = vmatprep.subr.mxu0 0.0
        %1324 = vmatpush1.msra.mxu0 0.0
        %1325 = vmatprep.subr.mxu0 0.0
        %1326 = vmatpush1.msra.mxu0 0.0
        %1327 = vmatprep.subr.mxu0 0.0
        %1328 = vmatpush1.msra.mxu0 0.0
        %1329 = vmatprep.subr.mxu0 0.0
        %1330 = vmatpush1.msra.mxu0 0.0
        %1331 = vmatprep.subr.mxu0 0.0
        %1332 = vmatpush1.msra.mxu0 0.0
        %1333 = vmatprep.subr.mxu0 0.0
        %1334 = vmatpush1.msra.mxu0 0.0
        %1335 = vmatprep.subr.mxu0 0.0
        %1336 = vmatpush1.msra.mxu0 0.0
        %1337 = vmatprep.subr.mxu0 0.0
        %1338 = vmatpush1.msra.mxu0 0.0
        %1339 = vmatprep.subr.mxu0 0.0
        %1340 = vmatpush1.msra.mxu0 0.0
        %1341 = vmatprep.subr.mxu0 0.0
        %1342 = vmatpush1.msra.mxu0 0.0
        %1343 = vmatprep.subr.mxu0 0.0
        %1344 = vmatpush1.msra.mxu0 0.0
        %1345 = vmatprep.subr.mxu0 0.0
        %1346 = vmatpush1.msra.mxu0 0.0
        %1347 = vmatprep.subr.mxu0 0.0
        %1348 = vmatpush1.msra.mxu0 0.0
        %1349 = vmatprep.subr.mxu0 0.0
        %1350 = vmatpush1.msra.mxu0 0.0
        %1351 = vmatprep.subr.mxu0 0.0
        %1352 = vmatpush1.msra.mxu0 0.0
        %1353 = vmatprep.subr.mxu0 0.0
        %1354 = vmatpush1.msra.mxu0 0.0
        %1355 = vmatprep.mubr.f32.mxu0 0.0
        %v1356 = vand.u32 %v216, 4294901760
        %1357 = vmatmul.mubr.f32.gmra.mrb[0].mxu0 %v1356
        %v1358 = vpop.f32.mrb[0].mxu0
        %v1359 = vadd.f32 %v1180, %v1358
        %v1360 = vpop.f32.mrb[0].mxu0
        %v1361 = vadd.f32 %v1182, %v1360
        %1362 = vmatprep.mubr.f32.mxu0 0.0
        %v1363 = vand.u32 %v219, 4294901760
        %1364 = vmatmul.mubr.f32.gmra.mrb[0].mxu0 %v1363
        %v1365 = vpop.f32.mrb[0].mxu0
        %v1366 = vadd.f32 %v1187, %v1365
        %v1367 = vpop.f32.mrb[0].mxu0
        %v1368 = vadd.f32 %v1189, %v1367
        %1369 = vmatprep.mubr.f32.mxu0 0.0
        %v1370 = vand.u32 %v222, 4294901760
        %1371 = vmatmul.mubr.f32.gmra.mrb[0].mxu0 %v1370
        %v1372 = vpop.f32.mrb[0].mxu0
        %v1373 = vadd.f32 %v1194, %v1372
        %v1374 = vpop.f32.mrb[0].mxu0
        %v1375 = vadd.f32 %v1196, %v1374
        %1376 = vmatprep.mubr.f32.mxu0 0.0
        %v1377 = vand.u32 %v225, 4294901760
        %1378 = vmatmul.mubr.f32.gmra.mrb[0].mxu0 %v1377
        %v1379 = vpop.f32.mrb[0].mxu0
        %v1380 = vadd.f32 %v1201, %v1379
        %v1381 = vpop.f32.mrb[0].mxu0
        %v1382 = vadd.f32 %v1203, %v1381
        %1383 = vmatprep.mubr.f32.mxu0 0.0
        %v1384 = vand.u32 %v228, 4294901760
        %1385 = vmatmul.mubr.f32.gmra.mrb[0].mxu0 %v1384
        %v1386 = vpop.f32.mrb[0].mxu0
        %v1387 = vadd.f32 %v1208, %v1386
        %v1388 = vpop.f32.mrb[0].mxu0
        %v1389 = vadd.f32 %v1210, %v1388
        %1390 = vmatprep.mubr.f32.mxu0 0.0
        %v1391 = vand.u32 %v231, 4294901760
        %1392 = vmatmul.mubr.f32.gmra.mrb[0].mxu0 %v1391
        %v1393 = vpop.f32.mrb[0].mxu0
        %v1394 = vadd.f32 %v1215, %v1393
        %v1395 = vpop.f32.mrb[0].mxu0
        %v1396 = vadd.f32 %v1217, %v1395
        %1397 = vmatprep.mubr.f32.mxu0 0.0
        %v1398 = vand.u32 %v234, 4294901760
        %1399 = vmatmul.mubr.f32.gmra.mrb[0].mxu0 %v1398
        %v1400 = vpop.f32.mrb[0].mxu0
        %v1401 = vadd.f32 %v1222, %v1400
        %v1402 = vpop.f32.mrb[0].mxu0
        %v1403 = vadd.f32 %v1224, %v1402
        %1404 = vmatprep.mubr.f32.mxu0 0.0
        %v1405 = vand.u32 %v237, 4294901760
        %1406 = vmatmul.mubr.f32.gmra.mrb[0].mxu0 %v1405
        %v1407 = vpop.f32.mrb[0].mxu0
        %v1408 = vadd.f32 %v1229, %v1407
        %v1409 = vpop.f32.mrb[0].mxu0
        %v1410 = vadd.f32 %v1231, %v1409
        %1411 = vmatprep.mubr.f32.mxu0 0.0
        %v1412 = vand.u32 %v240, 4294901760
        %1413 = vmatmul.mubr.f32.gmra.mrb[0].mxu0 %v1412
        %v1414 = vpop.f32.mrb[0].mxu0
        %v1415 = vadd.f32 %v1236, %v1414
        %v1416 = vpop.f32.mrb[0].mxu0
        %v1417 = vadd.f32 %v1238, %v1416
        %1418 = vmatprep.mubr.f32.mxu0 0.0
        %v1419 = vand.u32 %v243, 4294901760
        %1420 = vmatmul.mubr.f32.gmra.mrb[0].mxu0 %v1419
        %v1421 = vpop.f32.mrb[0].mxu0
        %v1422 = vadd.f32 %v1243, %v1421
        %v1423 = vpop.f32.mrb[0].mxu0
        %v1424 = vadd.f32 %v1245, %v1423
        %1425 = vmatprep.mubr.f32.mxu0 0.0
        %v1426 = vand.u32 %v246, 4294901760
        %1427 = vmatmul.mubr.f32.gmra.mrb[0].mxu0 %v1426
        %v1428 = vpop.f32.mrb[0].mxu0
        %v1429 = vadd.f32 %v1250, %v1428
        %v1430 = vpop.f32.mrb[0].mxu0
        %v1431 = vadd.f32 %v1252, %v1430
        %1432 = vmatprep.mubr.f32.mxu0 0.0
        %v1433 = vand.u32 %v249, 4294901760
        %1434 = vmatmul.mubr.f32.gmra.mrb[0].mxu0 %v1433
        %v1435 = vpop.f32.mrb[0].mxu0
        %v1436 = vadd.f32 %v1257, %v1435
        %v1437 = vpop.f32.mrb[0].mxu0
        %v1438 = vadd.f32 %v1259, %v1437
        %1439 = vmatprep.mubr.f32.mxu0 0.0
        %v1440 = vand.u32 %v252, 4294901760
        %1441 = vmatmul.mubr.f32.gmra.mrb[0].mxu0 %v1440
        %v1442 = vpop.f32.mrb[0].mxu0
        %v1443 = vadd.f32 %v1264, %v1442
        %v1444 = vpop.f32.mrb[0].mxu0
        %v1445 = vadd.f32 %v1266, %v1444
        %1446 = vmatprep.mubr.f32.mxu0 0.0
        %v1447 = vand.u32 %v255, 4294901760
        %1448 = vmatmul.mubr.f32.gmra.mrb[0].mxu0 %v1447
        %v1449 = vpop.f32.mrb[0].mxu0
        %v1450 = vadd.f32 %v1271, %v1449
        %v1451 = vpop.f32.mrb[0].mxu0
        %v1452 = vadd.f32 %v1273, %v1451
        %1453 = vmatprep.mubr.f32.mxu0 0.0
        %v1454 = vand.u32 %v258, 4294901760
        %1455 = vmatmul.mubr.f32.gmra.mrb[0].mxu0 %v1454
        %v1456 = vpop.f32.mrb[0].mxu0
        %v1457 = vadd.f32 %v1278, %v1456
        %v1458 = vpop.f32.mrb[0].mxu0
        %v1459 = vadd.f32 %v1280, %v1458
        %1460 = vmatprep.mubr.f32.mxu0 0.0
        %v1461 = vand.u32 %v261, 4294901760
        %1462 = vmatmul.mubr.f32.gmra.mrb[0].mxu0 %v1461
        %v1463 = vpop.f32.mrb[0].mxu0
        %v1464 = vadd.f32 %v1285, %v1463
        %v1465 = vpop.f32.mrb[0].mxu0
        %v1466 = vadd.f32 %v1287, %v1465
        %1467 = vdwg.mxu0
        %v1468 = vmul.f32 %v1359, 4.0
        %v1469 = vmul.f32 %v1361, 4.0
        %v1470 = vmul.f32 %v1366, 4.0
        %v1471 = vmul.f32 %v1368, 4.0
        %v1472 = vmul.f32 %v1373, 4.0
        %v1473 = vmul.f32 %v1375, 4.0
        %v1474 = vmul.f32 %v1380, 4.0
        %v1475 = vmul.f32 %v1382, 4.0
        %v1476 = vmul.f32 %v1387, 4.0
        %v1477 = vmul.f32 %v1389, 4.0
        %v1478 = vmul.f32 %v1394, 4.0
        %v1479 = vmul.f32 %v1396, 4.0
        %v1480 = vmul.f32 %v1401, 4.0
        %v1481 = vmul.f32 %v1403, 4.0
        %v1482 = vmul.f32 %v1408, 4.0
        %v1483 = vmul.f32 %v1410, 4.0
        %v1484 = vmul.f32 %v1415, 4.0
        %v1485 = vmul.f32 %v1417, 4.0
        %v1486 = vmul.f32 %v1422, 4.0
        %v1487 = vmul.f32 %v1424, 4.0
        %v1488 = vmul.f32 %v1429, 4.0
        %v1489 = vmul.f32 %v1431, 4.0
        %v1490 = vmul.f32 %v1436, 4.0
        %v1491 = vmul.f32 %v1438, 4.0
        %v1492 = vmul.f32 %v1443, 4.0
        %v1493 = vmul.f32 %v1445, 4.0
        %v1494 = vmul.f32 %v1450, 4.0
        %v1495 = vmul.f32 %v1452, 4.0
        %v1496 = vmul.f32 %v1457, 4.0
        %v1497 = vmul.f32 %v1459, 4.0
        %v1498 = vmul.f32 %v1464, 4.0
        %v1499 = vmul.f32 %v1466, 4.0
        %v1500 = vround.ne.pseudo %v1468
        %v1501 = vround.ne.pseudo %v1469
        %v1502 = vround.ne.pseudo %v1470
        %v1503 = vround.ne.pseudo %v1471
        %v1504 = vround.ne.pseudo %v1472
        %v1505 = vround.ne.pseudo %v1473
        %v1506 = vround.ne.pseudo %v1474
        %v1507 = vround.ne.pseudo %v1475
        %v1508 = vround.ne.pseudo %v1476
        %v1509 = vround.ne.pseudo %v1477
        %v1510 = vround.ne.pseudo %v1478
        %v1511 = vround.ne.pseudo %v1479
        %v1512 = vround.ne.pseudo %v1480
        %v1513 = vround.ne.pseudo %v1481
        %v1514 = vround.ne.pseudo %v1482
        %v1515 = vround.ne.pseudo %v1483
        %v1516 = vround.ne.pseudo %v1484
        %v1517 = vround.ne.pseudo %v1485
        %v1518 = vround.ne.pseudo %v1486
        %v1519 = vround.ne.pseudo %v1487
        %v1520 = vround.ne.pseudo %v1488
        %v1521 = vround.ne.pseudo %v1489
        %v1522 = vround.ne.pseudo %v1490
        %v1523 = vround.ne.pseudo %v1491
        %v1524 = vround.ne.pseudo %v1492
        %v1525 = vround.ne.pseudo %v1493
        %v1526 = vround.ne.pseudo %v1494
        %v1527 = vround.ne.pseudo %v1495
        %v1528 = vround.ne.pseudo %v1496
        %v1529 = vround.ne.pseudo %v1497
        %v1530 = vround.ne.pseudo %v1498
        %v1531 = vround.ne.pseudo %v1499
        %v1532 = vmul.f32 %v1500, 0.25
        %v1533 = vmul.f32 %v1501, 0.25
        %v1534 = vmul.f32 %v1502, 0.25
        %v1535 = vmul.f32 %v1503, 0.25
        %v1536 = vmul.f32 %v1504, 0.25
        %v1537 = vmul.f32 %v1505, 0.25
        %v1538 = vmul.f32 %v1506, 0.25
        %v1539 = vmul.f32 %v1507, 0.25
        %v1540 = vmul.f32 %v1508, 0.25
        %v1541 = vmul.f32 %v1509, 0.25
        %v1542 = vmul.f32 %v1510, 0.25
        %v1543 = vmul.f32 %v1511, 0.25
        %v1544 = vmul.f32 %v1512, 0.25
        %v1545 = vmul.f32 %v1513, 0.25
        %v1546 = vmul.f32 %v1514, 0.25
        %v1547 = vmul.f32 %v1515, 0.25
        %v1548 = vmul.f32 %v1516, 0.25
        %v1549 = vmul.f32 %v1517, 0.25
        %v1550 = vmul.f32 %v1518, 0.25
        %v1551 = vmul.f32 %v1519, 0.25
        %v1552 = vmul.f32 %v1520, 0.25
        %v1553 = vmul.f32 %v1521, 0.25
        %v1554 = vmul.f32 %v1522, 0.25
        %v1555 = vmul.f32 %v1523, 0.25
        %v1556 = vmul.f32 %v1524, 0.25
        %v1557 = vmul.f32 %v1525, 0.25
        %v1558 = vmul.f32 %v1526, 0.25
        %v1559 = vmul.f32 %v1527, 0.25
        %v1560 = vmul.f32 %v1528, 0.25
        %v1561 = vmul.f32 %v1529, 0.25
        %v1562 = vmul.f32 %v1530, 0.25
        %v1563 = vmul.f32 %v1531, 0.25
        %v1564 = vsub.f32 %v1359, %v1532
        %v1565 = vsub.f32 %v1361, %v1533
        %v1566 = vsub.f32 %v1366, %v1534
        %v1567 = vsub.f32 %v1368, %v1535
        %v1568 = vsub.f32 %v1373, %v1536
        %v1569 = vsub.f32 %v1375, %v1537
        %v1570 = vsub.f32 %v1380, %v1538
        %v1571 = vsub.f32 %v1382, %v1539
        %v1572 = vsub.f32 %v1387, %v1540
        %v1573 = vsub.f32 %v1389, %v1541
        %v1574 = vsub.f32 %v1394, %v1542
        %v1575 = vsub.f32 %v1396, %v1543
        %v1576 = vsub.f32 %v1401, %v1544
        %v1577 = vsub.f32 %v1403, %v1545
        %v1578 = vsub.f32 %v1408, %v1546
        %v1579 = vsub.f32 %v1410, %v1547
        %v1580 = vsub.f32 %v1415, %v1548
        %v1581 = vsub.f32 %v1417, %v1549
        %v1582 = vsub.f32 %v1422, %v1550
        %v1583 = vsub.f32 %v1424, %v1551
        %v1584 = vsub.f32 %v1429, %v1552
        %v1585 = vsub.f32 %v1431, %v1553
        %v1586 = vsub.f32 %v1436, %v1554
        %v1587 = vsub.f32 %v1438, %v1555
        %v1588 = vsub.f32 %v1443, %v1556
        %v1589 = vsub.f32 %v1445, %v1557
        %v1590 = vsub.f32 %v1450, %v1558
        %v1591 = vsub.f32 %v1452, %v1559
        %v1592 = vsub.f32 %v1457, %v1560
        %v1593 = vsub.f32 %v1459, %v1561
        %v1594 = vsub.f32 %v1464, %v1562
        %v1595 = vsub.f32 %v1466, %v1563
        %v1596 = vmul.f32 %v1564, 6.2831855
        %v1597 = vmul.f32 %v1565, 6.2831855
        %v1598 = vmul.f32 %v1566, 6.2831855
        %v1599 = vmul.f32 %v1567, 6.2831855
        %v1600 = vmul.f32 %v1568, 6.2831855
        %v1601 = vmul.f32 %v1569, 6.2831855
        %v1602 = vmul.f32 %v1570, 6.2831855
        %v1603 = vmul.f32 %v1571, 6.2831855
        %v1604 = vmul.f32 %v1572, 6.2831855
        %v1605 = vmul.f32 %v1573, 6.2831855
        %v1606 = vmul.f32 %v1574, 6.2831855
        %v1607 = vmul.f32 %v1575, 6.2831855
        %v1608 = vmul.f32 %v1576, 6.2831855
        %v1609 = vmul.f32 %v1577, 6.2831855
        %v1610 = vmul.f32 %v1578, 6.2831855
        %v1611 = vmul.f32 %v1579, 6.2831855
        %v1612 = vmul.f32 %v1580, 6.2831855
        %v1613 = vmul.f32 %v1581, 6.2831855
        %v1614 = vmul.f32 %v1582, 6.2831855
        %v1615 = vmul.f32 %v1583, 6.2831855
        %v1616 = vmul.f32 %v1584, 6.2831855
        %v1617 = vmul.f32 %v1585, 6.2831855
        %v1618 = vmul.f32 %v1586, 6.2831855
        %v1619 = vmul.f32 %v1587, 6.2831855
        %v1620 = vmul.f32 %v1588, 6.2831855
        %v1621 = vmul.f32 %v1589, 6.2831855
        %v1622 = vmul.f32 %v1590, 6.2831855
        %v1623 = vmul.f32 %v1591, 6.2831855
        %v1624 = vmul.f32 %v1592, 6.2831855
        %v1625 = vmul.f32 %v1593, 6.2831855
        %v1626 = vmul.f32 %v1594, 6.2831855
        %v1627 = vmul.f32 %v1595, 6.2831855
        %v1628 = vmul.f32 %v1596, %v1596
        %v1629 = vmul.f32 %v1597, %v1597
        %v1630 = vmul.f32 %v1598, %v1598
        %v1631 = vmul.f32 %v1599, %v1599
        %v1632 = vmul.f32 %v1600, %v1600
        %v1633 = vmul.f32 %v1601, %v1601
        %v1634 = vmul.f32 %v1602, %v1602
        %v1635 = vmul.f32 %v1603, %v1603
        %v1636 = vmul.f32 %v1604, %v1604
        %v1637 = vmul.f32 %v1605, %v1605
        %v1638 = vmul.f32 %v1606, %v1606
        %v1639 = vmul.f32 %v1607, %v1607
        %v1640 = vmul.f32 %v1608, %v1608
        %v1641 = vmul.f32 %v1609, %v1609
        %v1642 = vmul.f32 %v1610, %v1610
        %v1643 = vmul.f32 %v1611, %v1611
        %v1644 = vmul.f32 %v1612, %v1612
        %v1645 = vmul.f32 %v1613, %v1613
        %v1646 = vmul.f32 %v1614, %v1614
        %v1647 = vmul.f32 %v1615, %v1615
        %v1648 = vmul.f32 %v1616, %v1616
        %v1649 = vmul.f32 %v1617, %v1617
        %v1650 = vmul.f32 %v1618, %v1618
        %v1651 = vmul.f32 %v1619, %v1619
        %v1652 = vmul.f32 %v1620, %v1620
        %v1653 = vmul.f32 %v1621, %v1621
        %v1654 = vmul.f32 %v1622, %v1622
        %v1655 = vmul.f32 %v1623, %v1623
        %v1656 = vmul.f32 %v1624, %v1624
        %v1657 = vmul.f32 %v1625, %v1625
        %v1658 = vmul.f32 %v1626, %v1626
        %v1659 = vmul.f32 %v1627, %v1627
        %v1660 = vmul.f32 %v1628, -0.0001984127
        %v1661 = vmul.f32 %v1629, -0.0001984127
        %v1662 = vmul.f32 %v1630, -0.0001984127
        %v1663 = vmul.f32 %v1631, -0.0001984127
        %v1664 = vmul.f32 %v1632, -0.0001984127
        %v1665 = vmul.f32 %v1633, -0.0001984127
        %v1666 = vmul.f32 %v1634, -0.0001984127
        %v1667 = vmul.f32 %v1635, -0.0001984127
        %v1668 = vmul.f32 %v1636, -0.0001984127
        %v1669 = vmul.f32 %v1637, -0.0001984127
        %v1670 = vmul.f32 %v1638, -0.0001984127
        %v1671 = vmul.f32 %v1639, -0.0001984127
        %v1672 = vmul.f32 %v1640, -0.0001984127
        %v1673 = vmul.f32 %v1641, -0.0001984127
        %v1674 = vmul.f32 %v1642, -0.0001984127
        %v1675 = vmul.f32 %v1643, -0.0001984127
        %v1676 = vmul.f32 %v1644, -0.0001984127
        %v1677 = vmul.f32 %v1645, -0.0001984127
        %v1678 = vmul.f32 %v1646, -0.0001984127
        %v1679 = vmul.f32 %v1647, -0.0001984127
        %v1680 = vmul.f32 %v1648, -0.0001984127
        %v1681 = vmul.f32 %v1649, -0.0001984127
        %v1682 = vmul.f32 %v1650, -0.0001984127
        %v1683 = vmul.f32 %v1651, -0.0001984127
        %v1684 = vmul.f32 %v1652, -0.0001984127
        %v1685 = vmul.f32 %v1653, -0.0001984127
        %v1686 = vmul.f32 %v1654, -0.0001984127
        %v1687 = vmul.f32 %v1655, -0.0001984127
        %v1688 = vmul.f32 %v1656, -0.0001984127
        %v1689 = vmul.f32 %v1657, -0.0001984127
        %v1690 = vmul.f32 %v1658, -0.0001984127
        %v1691 = vmul.f32 %v1659, -0.0001984127
        %v1692 = vadd.f32 %v1660, 0.008333334
        %v1693 = vadd.f32 %v1661, 0.008333334
        %v1694 = vadd.f32 %v1662, 0.008333334
        %v1695 = vadd.f32 %v1663, 0.008333334
        %v1696 = vadd.f32 %v1664, 0.008333334
        %v1697 = vadd.f32 %v1665, 0.008333334
        %v1698 = vadd.f32 %v1666, 0.008333334
        %v1699 = vadd.f32 %v1667, 0.008333334
        %v1700 = vadd.f32 %v1668, 0.008333334
        %v1701 = vadd.f32 %v1669, 0.008333334
        %v1702 = vadd.f32 %v1670, 0.008333334
        %v1703 = vadd.f32 %v1671, 0.008333334
        %v1704 = vadd.f32 %v1672, 0.008333334
        %v1705 = vadd.f32 %v1673, 0.008333334
        %v1706 = vadd.f32 %v1674, 0.008333334
        %v1707 = vadd.f32 %v1675, 0.008333334
        %v1708 = vadd.f32 %v1676, 0.008333334
        %v1709 = vadd.f32 %v1677, 0.008333334
        %v1710 = vadd.f32 %v1678, 0.008333334
        %v1711 = vadd.f32 %v1679, 0.008333334
        %v1712 = vadd.f32 %v1680, 0.008333334
        %v1713 = vadd.f32 %v1681, 0.008333334
        %v1714 = vadd.f32 %v1682, 0.008333334
        %v1715 = vadd.f32 %v1683, 0.008333334
        %v1716 = vadd.f32 %v1684, 0.008333334
        %v1717 = vadd.f32 %v1685, 0.008333334
        %v1718 = vadd.f32 %v1686, 0.008333334
        %v1719 = vadd.f32 %v1687, 0.008333334
        %v1720 = vadd.f32 %v1688, 0.008333334
        %v1721 = vadd.f32 %v1689, 0.008333334
        %v1722 = vadd.f32 %v1690, 0.008333334
        %v1723 = vadd.f32 %v1691, 0.008333334
        %v1724 = vmul.f32 %v1628, %v1692
        %v1725 = vmul.f32 %v1629, %v1693
        %v1726 = vmul.f32 %v1630, %v1694
        %v1727 = vmul.f32 %v1631, %v1695
        %v1728 = vmul.f32 %v1632, %v1696
        %v1729 = vmul.f32 %v1633, %v1697
        %v1730 = vmul.f32 %v1634, %v1698
        %v1731 = vmul.f32 %v1635, %v1699
        %v1732 = vmul.f32 %v1636, %v1700
        %v1733 = vmul.f32 %v1637, %v1701
        %v1734 = vmul.f32 %v1638, %v1702
        %v1735 = vmul.f32 %v1639, %v1703
        %v1736 = vmul.f32 %v1640, %v1704
        %v1737 = vmul.f32 %v1641, %v1705
        %v1738 = vmul.f32 %v1642, %v1706
        %v1739 = vmul.f32 %v1643, %v1707
        %v1740 = vmul.f32 %v1644, %v1708
        %v1741 = vmul.f32 %v1645, %v1709
        %v1742 = vmul.f32 %v1646, %v1710
        %v1743 = vmul.f32 %v1647, %v1711
        %v1744 = vmul.f32 %v1648, %v1712
        %v1745 = vmul.f32 %v1649, %v1713
        %v1746 = vmul.f32 %v1650, %v1714
        %v1747 = vmul.f32 %v1651, %v1715
        %v1748 = vmul.f32 %v1652, %v1716
        %v1749 = vmul.f32 %v1653, %v1717
        %v1750 = vmul.f32 %v1654, %v1718
        %v1751 = vmul.f32 %v1655, %v1719
        %v1752 = vmul.f32 %v1656, %v1720
        %v1753 = vmul.f32 %v1657, %v1721
        %v1754 = vmul.f32 %v1658, %v1722
        %v1755 = vmul.f32 %v1659, %v1723
        %v1756 = vadd.f32 %v1724, -0.16666667
        %v1757 = vadd.f32 %v1725, -0.16666667
        %v1758 = vadd.f32 %v1726, -0.16666667
        %v1759 = vadd.f32 %v1727, -0.16666667
        %v1760 = vadd.f32 %v1728, -0.16666667
        %v1761 = vadd.f32 %v1729, -0.16666667
        %v1762 = vadd.f32 %v1730, -0.16666667
        %v1763 = vadd.f32 %v1731, -0.16666667
        %v1764 = vadd.f32 %v1732, -0.16666667
        %v1765 = vadd.f32 %v1733, -0.16666667
        %v1766 = vadd.f32 %v1734, -0.16666667
        %v1767 = vadd.f32 %v1735, -0.16666667
        %v1768 = vadd.f32 %v1736, -0.16666667
        %v1769 = vadd.f32 %v1737, -0.16666667
        %v1770 = vadd.f32 %v1738, -0.16666667
        %v1771 = vadd.f32 %v1739, -0.16666667
        %v1772 = vadd.f32 %v1740, -0.16666667
        %v1773 = vadd.f32 %v1741, -0.16666667
        %v1774 = vadd.f32 %v1742, -0.16666667
        %v1775 = vadd.f32 %v1743, -0.16666667
        %v1776 = vadd.f32 %v1744, -0.16666667
        %v1777 = vadd.f32 %v1745, -0.16666667
        %v1778 = vadd.f32 %v1746, -0.16666667
        %v1779 = vadd.f32 %v1747, -0.16666667
        %v1780 = vadd.f32 %v1748, -0.16666667
        %v1781 = vadd.f32 %v1749, -0.16666667
        %v1782 = vadd.f32 %v1750, -0.16666667
        %v1783 = vadd.f32 %v1751, -0.16666667
        %v1784 = vadd.f32 %v1752, -0.16666667
        %v1785 = vadd.f32 %v1753, -0.16666667
        %v1786 = vadd.f32 %v1754, -0.16666667
        %v1787 = vadd.f32 %v1755, -0.16666667
        %v1788 = vmul.f32 %v1628, %v1756
        %v1789 = vmul.f32 %v1629, %v1757
        %v1790 = vmul.f32 %v1630, %v1758
        %v1791 = vmul.f32 %v1631, %v1759
        %v1792 = vmul.f32 %v1632, %v1760
        %v1793 = vmul.f32 %v1633, %v1761
        %v1794 = vmul.f32 %v1634, %v1762
        %v1795 = vmul.f32 %v1635, %v1763
        %v1796 = vmul.f32 %v1636, %v1764
        %v1797 = vmul.f32 %v1637, %v1765
        %v1798 = vmul.f32 %v1638, %v1766
        %v1799 = vmul.f32 %v1639, %v1767
        %v1800 = vmul.f32 %v1640, %v1768
        %v1801 = vmul.f32 %v1641, %v1769
        %v1802 = vmul.f32 %v1642, %v1770
        %v1803 = vmul.f32 %v1643, %v1771
        %v1804 = vmul.f32 %v1644, %v1772
        %v1805 = vmul.f32 %v1645, %v1773
        %v1806 = vmul.f32 %v1646, %v1774
        %v1807 = vmul.f32 %v1647, %v1775
        %v1808 = vmul.f32 %v1648, %v1776
        %v1809 = vmul.f32 %v1649, %v1777
        %v1810 = vmul.f32 %v1650, %v1778
        %v1811 = vmul.f32 %v1651, %v1779
        %v1812 = vmul.f32 %v1652, %v1780
        %v1813 = vmul.f32 %v1653, %v1781
        %v1814 = vmul.f32 %v1654, %v1782
        %v1815 = vmul.f32 %v1655, %v1783
        %v1816 = vmul.f32 %v1656, %v1784
        %v1817 = vmul.f32 %v1657, %v1785
        %v1818 = vmul.f32 %v1658, %v1786
        %v1819 = vmul.f32 %v1659, %v1787
        %v1820 = vmul.f32 %v1596, %v1788
        %v1821 = vmul.f32 %v1597, %v1789
        %v1822 = vmul.f32 %v1598, %v1790
        %v1823 = vmul.f32 %v1599, %v1791
        %v1824 = vmul.f32 %v1600, %v1792
        %v1825 = vmul.f32 %v1601, %v1793
        %v1826 = vmul.f32 %v1602, %v1794
        %v1827 = vmul.f32 %v1603, %v1795
        %v1828 = vmul.f32 %v1604, %v1796
        %v1829 = vmul.f32 %v1605, %v1797
        %v1830 = vmul.f32 %v1606, %v1798
        %v1831 = vmul.f32 %v1607, %v1799
        %v1832 = vmul.f32 %v1608, %v1800
        %v1833 = vmul.f32 %v1609, %v1801
        %v1834 = vmul.f32 %v1610, %v1802
        %v1835 = vmul.f32 %v1611, %v1803
        %v1836 = vmul.f32 %v1612, %v1804
        %v1837 = vmul.f32 %v1613, %v1805
        %v1838 = vmul.f32 %v1614, %v1806
        %v1839 = vmul.f32 %v1615, %v1807
        %v1840 = vmul.f32 %v1616, %v1808
        %v1841 = vmul.f32 %v1617, %v1809
        %v1842 = vmul.f32 %v1618, %v1810
        %v1843 = vmul.f32 %v1619, %v1811
        %v1844 = vmul.f32 %v1620, %v1812
        %v1845 = vmul.f32 %v1621, %v1813
        %v1846 = vmul.f32 %v1622, %v1814
        %v1847 = vmul.f32 %v1623, %v1815
        %v1848 = vmul.f32 %v1624, %v1816
        %v1849 = vmul.f32 %v1625, %v1817
        %v1850 = vmul.f32 %v1626, %v1818
        %v1851 = vmul.f32 %v1627, %v1819
        %v1852 = vadd.f32 %v1596, %v1820
        %v1853 = vadd.f32 %v1597, %v1821
        %v1854 = vadd.f32 %v1598, %v1822
        %v1855 = vadd.f32 %v1599, %v1823
        %v1856 = vadd.f32 %v1600, %v1824
        %v1857 = vadd.f32 %v1601, %v1825
        %v1858 = vadd.f32 %v1602, %v1826
        %v1859 = vadd.f32 %v1603, %v1827
        %v1860 = vadd.f32 %v1604, %v1828
        %v1861 = vadd.f32 %v1605, %v1829
        %v1862 = vadd.f32 %v1606, %v1830
        %v1863 = vadd.f32 %v1607, %v1831
        %v1864 = vadd.f32 %v1608, %v1832
        %v1865 = vadd.f32 %v1609, %v1833
        %v1866 = vadd.f32 %v1610, %v1834
        %v1867 = vadd.f32 %v1611, %v1835
        %v1868 = vadd.f32 %v1612, %v1836
        %v1869 = vadd.f32 %v1613, %v1837
        %v1870 = vadd.f32 %v1614, %v1838
        %v1871 = vadd.f32 %v1615, %v1839
        %v1872 = vadd.f32 %v1616, %v1840
        %v1873 = vadd.f32 %v1617, %v1841
        %v1874 = vadd.f32 %v1618, %v1842
        %v1875 = vadd.f32 %v1619, %v1843
        %v1876 = vadd.f32 %v1620, %v1844
        %v1877 = vadd.f32 %v1621, %v1845
        %v1878 = vadd.f32 %v1622, %v1846
        %v1879 = vadd.f32 %v1623, %v1847
        %v1880 = vadd.f32 %v1624, %v1848
        %v1881 = vadd.f32 %v1625, %v1849
        %v1882 = vadd.f32 %v1626, %v1850
        %v1883 = vadd.f32 %v1627, %v1851
        %v1884 = vmul.f32 %v1628, 2.4801588e-05
        %v1885 = vmul.f32 %v1629, 2.4801588e-05
        %v1886 = vmul.f32 %v1630, 2.4801588e-05
        %v1887 = vmul.f32 %v1631, 2.4801588e-05
        %v1888 = vmul.f32 %v1632, 2.4801588e-05
        %v1889 = vmul.f32 %v1633, 2.4801588e-05
        %v1890 = vmul.f32 %v1634, 2.4801588e-05
        %v1891 = vmul.f32 %v1635, 2.4801588e-05
        %v1892 = vmul.f32 %v1636, 2.4801588e-05
        %v1893 = vmul.f32 %v1637, 2.4801588e-05
        %v1894 = vmul.f32 %v1638, 2.4801588e-05
        %v1895 = vmul.f32 %v1639, 2.4801588e-05
        %v1896 = vmul.f32 %v1640, 2.4801588e-05
        %v1897 = vmul.f32 %v1641, 2.4801588e-05
        %v1898 = vmul.f32 %v1642, 2.4801588e-05
        %v1899 = vmul.f32 %v1643, 2.4801588e-05
        %v1900 = vmul.f32 %v1644, 2.4801588e-05
        %v1901 = vmul.f32 %v1645, 2.4801588e-05
        %v1902 = vmul.f32 %v1646, 2.4801588e-05
        %v1903 = vmul.f32 %v1647, 2.4801588e-05
        %v1904 = vmul.f32 %v1648, 2.4801588e-05
        %v1905 = vmul.f32 %v1649, 2.4801588e-05
        %v1906 = vmul.f32 %v1650, 2.4801588e-05
        %v1907 = vmul.f32 %v1651, 2.4801588e-05
        %v1908 = vmul.f32 %v1652, 2.4801588e-05
        %v1909 = vmul.f32 %v1653, 2.4801588e-05
        %v1910 = vmul.f32 %v1654, 2.4801588e-05
        %v1911 = vmul.f32 %v1655, 2.4801588e-05
        %v1912 = vmul.f32 %v1656, 2.4801588e-05
        %v1913 = vmul.f32 %v1657, 2.4801588e-05
        %v1914 = vmul.f32 %v1658, 2.4801588e-05
        %v1915 = vmul.f32 %v1659, 2.4801588e-05
        %v1916 = vadd.f32 %v1884, -0.0013888889
        %v1917 = vadd.f32 %v1885, -0.0013888889
        %v1918 = vadd.f32 %v1886, -0.0013888889
        %v1919 = vadd.f32 %v1887, -0.0013888889
        %v1920 = vadd.f32 %v1888, -0.0013888889
        %v1921 = vadd.f32 %v1889, -0.0013888889
        %v1922 = vadd.f32 %v1890, -0.0013888889
        %v1923 = vadd.f32 %v1891, -0.0013888889
        %v1924 = vadd.f32 %v1892, -0.0013888889
        %v1925 = vadd.f32 %v1893, -0.0013888889
        %v1926 = vadd.f32 %v1894, -0.0013888889
        %v1927 = vadd.f32 %v1895, -0.0013888889
        %v1928 = vadd.f32 %v1896, -0.0013888889
        %v1929 = vadd.f32 %v1897, -0.0013888889
        %v1930 = vadd.f32 %v1898, -0.0013888889
        %v1931 = vadd.f32 %v1899, -0.0013888889
        %v1932 = vadd.f32 %v1900, -0.0013888889
        %v1933 = vadd.f32 %v1901, -0.0013888889
        %v1934 = vadd.f32 %v1902, -0.0013888889
        %v1935 = vadd.f32 %v1903, -0.0013888889
        %v1936 = vadd.f32 %v1904, -0.0013888889
        %v1937 = vadd.f32 %v1905, -0.0013888889
        %v1938 = vadd.f32 %v1906, -0.0013888889
        %v1939 = vadd.f32 %v1907, -0.0013888889
        %v1940 = vadd.f32 %v1908, -0.0013888889
        %v1941 = vadd.f32 %v1909, -0.0013888889
        %v1942 = vadd.f32 %v1910, -0.0013888889
        %v1943 = vadd.f32 %v1911, -0.0013888889
        %v1944 = vadd.f32 %v1912, -0.0013888889
        %v1945 = vadd.f32 %v1913, -0.0013888889
        %v1946 = vadd.f32 %v1914, -0.0013888889
        %v1947 = vadd.f32 %v1915, -0.0013888889
        %v1948 = vmul.f32 %v1628, %v1916
        %v1949 = vmul.f32 %v1629, %v1917
        %v1950 = vmul.f32 %v1630, %v1918
        %v1951 = vmul.f32 %v1631, %v1919
        %v1952 = vmul.f32 %v1632, %v1920
        %v1953 = vmul.f32 %v1633, %v1921
        %v1954 = vmul.f32 %v1634, %v1922
        %v1955 = vmul.f32 %v1635, %v1923
        %v1956 = vmul.f32 %v1636, %v1924
        %v1957 = vmul.f32 %v1637, %v1925
        %v1958 = vmul.f32 %v1638, %v1926
        %v1959 = vmul.f32 %v1639, %v1927
        %v1960 = vmul.f32 %v1640, %v1928
        %v1961 = vmul.f32 %v1641, %v1929
        %v1962 = vmul.f32 %v1642, %v1930
        %v1963 = vmul.f32 %v1643, %v1931
        %v1964 = vmul.f32 %v1644, %v1932
        %v1965 = vmul.f32 %v1645, %v1933
        %v1966 = vmul.f32 %v1646, %v1934
        %v1967 = vmul.f32 %v1647, %v1935
        %v1968 = vmul.f32 %v1648, %v1936
        %v1969 = vmul.f32 %v1649, %v1937
        %v1970 = vmul.f32 %v1650, %v1938
        %v1971 = vmul.f32 %v1651, %v1939
        %v1972 = vmul.f32 %v1652, %v1940
        %v1973 = vmul.f32 %v1653, %v1941
        %v1974 = vmul.f32 %v1654, %v1942
        %v1975 = vmul.f32 %v1655, %v1943
        %v1976 = vmul.f32 %v1656, %v1944
        %v1977 = vmul.f32 %v1657, %v1945
        %v1978 = vmul.f32 %v1658, %v1946
        %v1979 = vmul.f32 %v1659, %v1947
        %v1980 = vadd.f32 %v1948, 0.041666668
        %v1981 = vadd.f32 %v1949, 0.041666668
        %v1982 = vadd.f32 %v1950, 0.041666668
        %v1983 = vadd.f32 %v1951, 0.041666668
        %v1984 = vadd.f32 %v1952, 0.041666668
        %v1985 = vadd.f32 %v1953, 0.041666668
        %v1986 = vadd.f32 %v1954, 0.041666668
        %v1987 = vadd.f32 %v1955, 0.041666668
        %v1988 = vadd.f32 %v1956, 0.041666668
        %v1989 = vadd.f32 %v1957, 0.041666668
        %v1990 = vadd.f32 %v1958, 0.041666668
        %v1991 = vadd.f32 %v1959, 0.041666668
        %v1992 = vadd.f32 %v1960, 0.041666668
        %v1993 = vadd.f32 %v1961, 0.041666668
        %v1994 = vadd.f32 %v1962, 0.041666668
        %v1995 = vadd.f32 %v1963, 0.041666668
        %v1996 = vadd.f32 %v1964, 0.041666668
        %v1997 = vadd.f32 %v1965, 0.041666668
        %v1998 = vadd.f32 %v1966, 0.041666668
        %v1999 = vadd.f32 %v1967, 0.041666668
        %v2000 = vadd.f32 %v1968, 0.041666668
        %v2001 = vadd.f32 %v1969, 0.041666668
        %v2002 = vadd.f32 %v1970, 0.041666668
        %v2003 = vadd.f32 %v1971, 0.041666668
        %v2004 = vadd.f32 %v1972, 0.041666668
        %v2005 = vadd.f32 %v1973, 0.041666668
        %v2006 = vadd.f32 %v1974, 0.041666668
        %v2007 = vadd.f32 %v1975, 0.041666668
        %v2008 = vadd.f32 %v1976, 0.041666668
        %v2009 = vadd.f32 %v1977, 0.041666668
        %v2010 = vadd.f32 %v1978, 0.041666668
        %v2011 = vadd.f32 %v1979, 0.041666668
        %v2012 = vmul.f32 %v1628, %v1980
        %v2013 = vmul.f32 %v1629, %v1981
        %v2014 = vmul.f32 %v1630, %v1982
        %v2015 = vmul.f32 %v1631, %v1983
        %v2016 = vmul.f32 %v1632, %v1984
        %v2017 = vmul.f32 %v1633, %v1985
        %v2018 = vmul.f32 %v1634, %v1986
        %v2019 = vmul.f32 %v1635, %v1987
        %v2020 = vmul.f32 %v1636, %v1988
        %v2021 = vmul.f32 %v1637, %v1989
        %v2022 = vmul.f32 %v1638, %v1990
        %v2023 = vmul.f32 %v1639, %v1991
        %v2024 = vmul.f32 %v1640, %v1992
        %v2025 = vmul.f32 %v1641, %v1993
        %v2026 = vmul.f32 %v1642, %v1994
        %v2027 = vmul.f32 %v1643, %v1995
        %v2028 = vmul.f32 %v1644, %v1996
        %v2029 = vmul.f32 %v1645, %v1997
        %v2030 = vmul.f32 %v1646, %v1998
        %v2031 = vmul.f32 %v1647, %v1999
        %v2032 = vmul.f32 %v1648, %v2000
        %v2033 = vmul.f32 %v1649, %v2001
        %v2034 = vmul.f32 %v1650, %v2002
        %v2035 = vmul.f32 %v1651, %v2003
        %v2036 = vmul.f32 %v1652, %v2004
        %v2037 = vmul.f32 %v1653, %v2005
        %v2038 = vmul.f32 %v1654, %v2006
        %v2039 = vmul.f32 %v1655, %v2007
        %v2040 = vmul.f32 %v1656, %v2008
        %v2041 = vmul.f32 %v1657, %v2009
        %v2042 = vmul.f32 %v1658, %v2010
        %v2043 = vmul.f32 %v1659, %v2011
        %v2044 = vadd.f32 %v2012, -0.5
        %v2045 = vadd.f32 %v2013, -0.5
        %v2046 = vadd.f32 %v2014, -0.5
        %v2047 = vadd.f32 %v2015, -0.5
        %v2048 = vadd.f32 %v2016, -0.5
        %v2049 = vadd.f32 %v2017, -0.5
        %v2050 = vadd.f32 %v2018, -0.5
        %v2051 = vadd.f32 %v2019, -0.5
        %v2052 = vadd.f32 %v2020, -0.5
        %v2053 = vadd.f32 %v2021, -0.5
        %v2054 = vadd.f32 %v2022, -0.5
        %v2055 = vadd.f32 %v2023, -0.5
        %v2056 = vadd.f32 %v2024, -0.5
        %v2057 = vadd.f32 %v2025, -0.5
        %v2058 = vadd.f32 %v2026, -0.5
        %v2059 = vadd.f32 %v2027, -0.5
        %v2060 = vadd.f32 %v2028, -0.5
        %v2061 = vadd.f32 %v2029, -0.5
        %v2062 = vadd.f32 %v2030, -0.5
        %v2063 = vadd.f32 %v2031, -0.5
        %v2064 = vadd.f32 %v2032, -0.5
        %v2065 = vadd.f32 %v2033, -0.5
        %v2066 = vadd.f32 %v2034, -0.5
        %v2067 = vadd.f32 %v2035, -0.5
        %v2068 = vadd.f32 %v2036, -0.5
        %v2069 = vadd.f32 %v2037, -0.5
        %v2070 = vadd.f32 %v2038, -0.5
        %v2071 = vadd.f32 %v2039, -0.5
        %v2072 = vadd.f32 %v2040, -0.5
        %v2073 = vadd.f32 %v2041, -0.5
        %v2074 = vadd.f32 %v2042, -0.5
        %v2075 = vadd.f32 %v2043, -0.5
        %v2076 = vmul.f32 %v1628, %v2044
        %v2077 = vmul.f32 %v1629, %v2045
        %v2078 = vmul.f32 %v1630, %v2046
        %v2079 = vmul.f32 %v1631, %v2047
        %v2080 = vmul.f32 %v1632, %v2048
        %v2081 = vmul.f32 %v1633, %v2049
        %v2082 = vmul.f32 %v1634, %v2050
        %v2083 = vmul.f32 %v1635, %v2051
        %v2084 = vmul.f32 %v1636, %v2052
        %v2085 = vmul.f32 %v1637, %v2053
        %v2086 = vmul.f32 %v1638, %v2054
        %v2087 = vmul.f32 %v1639, %v2055
        %v2088 = vmul.f32 %v1640, %v2056
        %v2089 = vmul.f32 %v1641, %v2057
        %v2090 = vmul.f32 %v1642, %v2058
        %v2091 = vmul.f32 %v1643, %v2059
        %v2092 = vmul.f32 %v1644, %v2060
        %v2093 = vmul.f32 %v1645, %v2061
        %v2094 = vmul.f32 %v1646, %v2062
        %v2095 = vmul.f32 %v1647, %v2063
        %v2096 = vmul.f32 %v1648, %v2064
        %v2097 = vmul.f32 %v1649, %v2065
        %v2098 = vmul.f32 %v1650, %v2066
        %v2099 = vmul.f32 %v1651, %v2067
        %v2100 = vmul.f32 %v1652, %v2068
        %v2101 = vmul.f32 %v1653, %v2069
        %v2102 = vmul.f32 %v1654, %v2070
        %v2103 = vmul.f32 %v1655, %v2071
        %v2104 = vmul.f32 %v1656, %v2072
        %v2105 = vmul.f32 %v1657, %v2073
        %v2106 = vmul.f32 %v1658, %v2074
        %v2107 = vmul.f32 %v1659, %v2075
        %v2108 = vadd.f32 %v2076, 1.0
        %v2109 = vadd.f32 %v2077, 1.0
        %v2110 = vadd.f32 %v2078, 1.0
        %v2111 = vadd.f32 %v2079, 1.0
        %v2112 = vadd.f32 %v2080, 1.0
        %v2113 = vadd.f32 %v2081, 1.0
        %v2114 = vadd.f32 %v2082, 1.0
        %v2115 = vadd.f32 %v2083, 1.0
        %v2116 = vadd.f32 %v2084, 1.0
        %v2117 = vadd.f32 %v2085, 1.0
        %v2118 = vadd.f32 %v2086, 1.0
        %v2119 = vadd.f32 %v2087, 1.0
        %v2120 = vadd.f32 %v2088, 1.0
        %v2121 = vadd.f32 %v2089, 1.0
        %v2122 = vadd.f32 %v2090, 1.0
        %v2123 = vadd.f32 %v2091, 1.0
        %v2124 = vadd.f32 %v2092, 1.0
        %v2125 = vadd.f32 %v2093, 1.0
        %v2126 = vadd.f32 %v2094, 1.0
        %v2127 = vadd.f32 %v2095, 1.0
        %v2128 = vadd.f32 %v2096, 1.0
        %v2129 = vadd.f32 %v2097, 1.0
        %v2130 = vadd.f32 %v2098, 1.0
        %v2131 = vadd.f32 %v2099, 1.0
        %v2132 = vadd.f32 %v2100, 1.0
        %v2133 = vadd.f32 %v2101, 1.0
        %v2134 = vadd.f32 %v2102, 1.0
        %v2135 = vadd.f32 %v2103, 1.0
        %v2136 = vadd.f32 %v2104, 1.0
        %v2137 = vadd.f32 %v2105, 1.0
        %v2138 = vadd.f32 %v2106, 1.0
        %v2139 = vadd.f32 %v2107, 1.0
        %v2140 = vcvt.f32.s32.ties.to.even %v1468
        %v2141 = vcvt.f32.s32.ties.to.even %v1469
        %v2142 = vcvt.f32.s32.ties.to.even %v1470
        %v2143 = vcvt.f32.s32.ties.to.even %v1471
        %v2144 = vcvt.f32.s32.ties.to.even %v1472
        %v2145 = vcvt.f32.s32.ties.to.even %v1473
        %v2146 = vcvt.f32.s32.ties.to.even %v1474
        %v2147 = vcvt.f32.s32.ties.to.even %v1475
        %v2148 = vcvt.f32.s32.ties.to.even %v1476
        %v2149 = vcvt.f32.s32.ties.to.even %v1477
        %v2150 = vcvt.f32.s32.ties.to.even %v1478
        %v2151 = vcvt.f32.s32.ties.to.even %v1479
        %v2152 = vcvt.f32.s32.ties.to.even %v1480
        %v2153 = vcvt.f32.s32.ties.to.even %v1481
        %v2154 = vcvt.f32.s32.ties.to.even %v1482
        %v2155 = vcvt.f32.s32.ties.to.even %v1483
        %v2156 = vcvt.f32.s32.ties.to.even %v1484
        %v2157 = vcvt.f32.s32.ties.to.even %v1485
        %v2158 = vcvt.f32.s32.ties.to.even %v1486
        %v2159 = vcvt.f32.s32.ties.to.even %v1487
        %v2160 = vcvt.f32.s32.ties.to.even %v1488
        %v2161 = vcvt.f32.s32.ties.to.even %v1489
        %v2162 = vcvt.f32.s32.ties.to.even %v1490
        %v2163 = vcvt.f32.s32.ties.to.even %v1491
        %v2164 = vcvt.f32.s32.ties.to.even %v1492
        %v2165 = vcvt.f32.s32.ties.to.even %v1493
        %v2166 = vcvt.f32.s32.ties.to.even %v1494
        %v2167 = vcvt.f32.s32.ties.to.even %v1495
        %v2168 = vcvt.f32.s32.ties.to.even %v1496
        %v2169 = vcvt.f32.s32.ties.to.even %v1497
        %v2170 = vcvt.f32.s32.ties.to.even %v1498
        %v2171 = vcvt.f32.s32.ties.to.even %v1499
        %v2172 = vand.u32 %v2140, 1
        %v2173 = vand.u32 %v2141, 1
        %v2174 = vand.u32 %v2142, 1
        %v2175 = vand.u32 %v2143, 1
        %v2176 = vand.u32 %v2144, 1
        %v2177 = vand.u32 %v2145, 1
        %v2178 = vand.u32 %v2146, 1
        %v2179 = vand.u32 %v2147, 1
        %v2180 = vand.u32 %v2148, 1
        %v2181 = vand.u32 %v2149, 1
        %v2182 = vand.u32 %v2150, 1
        %v2183 = vand.u32 %v2151, 1
        %v2184 = vand.u32 %v2152, 1
        %v2185 = vand.u32 %v2153, 1
        %v2186 = vand.u32 %v2154, 1
        %v2187 = vand.u32 %v2155, 1
        %v2188 = vand.u32 %v2156, 1
        %v2189 = vand.u32 %v2157, 1
        %v2190 = vand.u32 %v2158, 1
        %v2191 = vand.u32 %v2159, 1
        %v2192 = vand.u32 %v2160, 1
        %v2193 = vand.u32 %v2161, 1
        %v2194 = vand.u32 %v2162, 1
        %v2195 = vand.u32 %v2163, 1
        %v2196 = vand.u32 %v2164, 1
        %v2197 = vand.u32 %v2165, 1
        %v2198 = vand.u32 %v2166, 1
        %v2199 = vand.u32 %v2167, 1
        %v2200 = vand.u32 %v2168, 1
        %v2201 = vand.u32 %v2169, 1
        %v2202 = vand.u32 %v2170, 1
        %v2203 = vand.u32 %v2171, 1
        %vm2204 = vcmp.ne.s32.totalorder %v2172, 0
        %vm2205 = vcmp.ne.s32.totalorder %v2173, 0
        %vm2206 = vcmp.ne.s32.totalorder %v2174, 0
        %vm2207 = vcmp.ne.s32.totalorder %v2175, 0
        %vm2208 = vcmp.ne.s32.totalorder %v2176, 0
        %vm2209 = vcmp.ne.s32.totalorder %v2177, 0
        %vm2210 = vcmp.ne.s32.totalorder %v2178, 0
        %vm2211 = vcmp.ne.s32.totalorder %v2179, 0
        %vm2212 = vcmp.ne.s32.totalorder %v2180, 0
        %vm2213 = vcmp.ne.s32.totalorder %v2181, 0
        %vm2214 = vcmp.ne.s32.totalorder %v2182, 0
        %vm2215 = vcmp.ne.s32.totalorder %v2183, 0
        %vm2216 = vcmp.ne.s32.totalorder %v2184, 0
        %vm2217 = vcmp.ne.s32.totalorder %v2185, 0
        %vm2218 = vcmp.ne.s32.totalorder %v2186, 0
        %vm2219 = vcmp.ne.s32.totalorder %v2187, 0
        %vm2220 = vcmp.ne.s32.totalorder %v2188, 0
        %vm2221 = vcmp.ne.s32.totalorder %v2189, 0
        %vm2222 = vcmp.ne.s32.totalorder %v2190, 0
        %vm2223 = vcmp.ne.s32.totalorder %v2191, 0
        %vm2224 = vcmp.ne.s32.totalorder %v2192, 0
        %vm2225 = vcmp.ne.s32.totalorder %v2193, 0
        %vm2226 = vcmp.ne.s32.totalorder %v2194, 0
        %vm2227 = vcmp.ne.s32.totalorder %v2195, 0
        %vm2228 = vcmp.ne.s32.totalorder %v2196, 0
        %vm2229 = vcmp.ne.s32.totalorder %v2197, 0
        %vm2230 = vcmp.ne.s32.totalorder %v2198, 0
        %vm2231 = vcmp.ne.s32.totalorder %v2199, 0
        %vm2232 = vcmp.ne.s32.totalorder %v2200, 0
        %vm2233 = vcmp.ne.s32.totalorder %v2201, 0
        %vm2234 = vcmp.ne.s32.totalorder %v2202, 0
        %vm2235 = vcmp.ne.s32.totalorder %v2203, 0
        %v2236 = vand.u32 %v2140, 2
        %v2237 = vand.u32 %v2141, 2
        %v2238 = vand.u32 %v2142, 2
        %v2239 = vand.u32 %v2143, 2
        %v2240 = vand.u32 %v2144, 2
        %v2241 = vand.u32 %v2145, 2
        %v2242 = vand.u32 %v2146, 2
        %v2243 = vand.u32 %v2147, 2
        %v2244 = vand.u32 %v2148, 2
        %v2245 = vand.u32 %v2149, 2
        %v2246 = vand.u32 %v2150, 2
        %v2247 = vand.u32 %v2151, 2
        %v2248 = vand.u32 %v2152, 2
        %v2249 = vand.u32 %v2153, 2
        %v2250 = vand.u32 %v2154, 2
        %v2251 = vand.u32 %v2155, 2
        %v2252 = vand.u32 %v2156, 2
        %v2253 = vand.u32 %v2157, 2
        %v2254 = vand.u32 %v2158, 2
        %v2255 = vand.u32 %v2159, 2
        %v2256 = vand.u32 %v2160, 2
        %v2257 = vand.u32 %v2161, 2
        %v2258 = vand.u32 %v2162, 2
        %v2259 = vand.u32 %v2163, 2
        %v2260 = vand.u32 %v2164, 2
        %v2261 = vand.u32 %v2165, 2
        %v2262 = vand.u32 %v2166, 2
        %v2263 = vand.u32 %v2167, 2
        %v2264 = vand.u32 %v2168, 2
        %v2265 = vand.u32 %v2169, 2
        %v2266 = vand.u32 %v2170, 2
        %v2267 = vand.u32 %v2171, 2
        %vm2268 = vcmp.ne.s32.totalorder %v2236, 0
        %vm2269 = vcmp.ne.s32.totalorder %v2237, 0
        %vm2270 = vcmp.ne.s32.totalorder %v2238, 0
        %vm2271 = vcmp.ne.s32.totalorder %v2239, 0
        %vm2272 = vcmp.ne.s32.totalorder %v2240, 0
        %vm2273 = vcmp.ne.s32.totalorder %v2241, 0
        %vm2274 = vcmp.ne.s32.totalorder %v2242, 0
        %vm2275 = vcmp.ne.s32.totalorder %v2243, 0
        %vm2276 = vcmp.ne.s32.totalorder %v2244, 0
        %vm2277 = vcmp.ne.s32.totalorder %v2245, 0
        %vm2278 = vcmp.ne.s32.totalorder %v2246, 0
        %vm2279 = vcmp.ne.s32.totalorder %v2247, 0
        %vm2280 = vcmp.ne.s32.totalorder %v2248, 0
        %vm2281 = vcmp.ne.s32.totalorder %v2249, 0
        %vm2282 = vcmp.ne.s32.totalorder %v2250, 0
        %vm2283 = vcmp.ne.s32.totalorder %v2251, 0
        %vm2284 = vcmp.ne.s32.totalorder %v2252, 0
        %vm2285 = vcmp.ne.s32.totalorder %v2253, 0
        %vm2286 = vcmp.ne.s32.totalorder %v2254, 0
        %vm2287 = vcmp.ne.s32.totalorder %v2255, 0
        %vm2288 = vcmp.ne.s32.totalorder %v2256, 0
        %vm2289 = vcmp.ne.s32.totalorder %v2257, 0
        %vm2290 = vcmp.ne.s32.totalorder %v2258, 0
        %vm2291 = vcmp.ne.s32.totalorder %v2259, 0
        %vm2292 = vcmp.ne.s32.totalorder %v2260, 0
        %vm2293 = vcmp.ne.s32.totalorder %v2261, 0
        %vm2294 = vcmp.ne.s32.totalorder %v2262, 0
        %vm2295 = vcmp.ne.s32.totalorder %v2263, 0
        %vm2296 = vcmp.ne.s32.totalorder %v2264, 0
        %vm2297 = vcmp.ne.s32.totalorder %v2265, 0
        %vm2298 = vcmp.ne.s32.totalorder %v2266, 0
        %vm2299 = vcmp.ne.s32.totalorder %v2267, 0
        %v2300 = vadd.s32 %v2140, 1
        %v2301 = vadd.s32 %v2141, 1
        %v2302 = vadd.s32 %v2142, 1
        %v2303 = vadd.s32 %v2143, 1
        %v2304 = vadd.s32 %v2144, 1
        %v2305 = vadd.s32 %v2145, 1
        %v2306 = vadd.s32 %v2146, 1
        %v2307 = vadd.s32 %v2147, 1
        %v2308 = vadd.s32 %v2148, 1
        %v2309 = vadd.s32 %v2149, 1
        %v2310 = vadd.s32 %v2150, 1
        %v2311 = vadd.s32 %v2151, 1
        %v2312 = vadd.s32 %v2152, 1
        %v2313 = vadd.s32 %v2153, 1
        %v2314 = vadd.s32 %v2154, 1
        %v2315 = vadd.s32 %v2155, 1
        %v2316 = vadd.s32 %v2156, 1
        %v2317 = vadd.s32 %v2157, 1
        %v2318 = vadd.s32 %v2158, 1
        %v2319 = vadd.s32 %v2159, 1
        %v2320 = vadd.s32 %v2160, 1
        %v2321 = vadd.s32 %v2161, 1
        %v2322 = vadd.s32 %v2162, 1
        %v2323 = vadd.s32 %v2163, 1
        %v2324 = vadd.s32 %v2164, 1
        %v2325 = vadd.s32 %v2165, 1
        %v2326 = vadd.s32 %v2166, 1
        %v2327 = vadd.s32 %v2167, 1
        %v2328 = vadd.s32 %v2168, 1
        %v2329 = vadd.s32 %v2169, 1
        %v2330 = vadd.s32 %v2170, 1
        %v2331 = vadd.s32 %v2171, 1
        %v2332 = vand.u32 %v2300, 2
        %v2333 = vand.u32 %v2301, 2
        %v2334 = vand.u32 %v2302, 2
        %v2335 = vand.u32 %v2303, 2
        %v2336 = vand.u32 %v2304, 2
        %v2337 = vand.u32 %v2305, 2
        %v2338 = vand.u32 %v2306, 2
        %v2339 = vand.u32 %v2307, 2
        %v2340 = vand.u32 %v2308, 2
        %v2341 = vand.u32 %v2309, 2
        %v2342 = vand.u32 %v2310, 2
        %v2343 = vand.u32 %v2311, 2
        %v2344 = vand.u32 %v2312, 2
        %v2345 = vand.u32 %v2313, 2
        %v2346 = vand.u32 %v2314, 2
        %v2347 = vand.u32 %v2315, 2
        %v2348 = vand.u32 %v2316, 2
        %v2349 = vand.u32 %v2317, 2
        %v2350 = vand.u32 %v2318, 2
        %v2351 = vand.u32 %v2319, 2
        %v2352 = vand.u32 %v2320, 2
        %v2353 = vand.u32 %v2321, 2
        %v2354 = vand.u32 %v2322, 2
        %v2355 = vand.u32 %v2323, 2
        %v2356 = vand.u32 %v2324, 2
        %v2357 = vand.u32 %v2325, 2
        %v2358 = vand.u32 %v2326, 2
        %v2359 = vand.u32 %v2327, 2
        %v2360 = vand.u32 %v2328, 2
        %v2361 = vand.u32 %v2329, 2
        %v2362 = vand.u32 %v2330, 2
        %v2363 = vand.u32 %v2331, 2
        %vm2364 = vcmp.ne.s32.totalorder %v2332, 0
        %vm2365 = vcmp.ne.s32.totalorder %v2333, 0
        %vm2366 = vcmp.ne.s32.totalorder %v2334, 0
        %vm2367 = vcmp.ne.s32.totalorder %v2335, 0
        %vm2368 = vcmp.ne.s32.totalorder %v2336, 0
        %vm2369 = vcmp.ne.s32.totalorder %v2337, 0
        %vm2370 = vcmp.ne.s32.totalorder %v2338, 0
        %vm2371 = vcmp.ne.s32.totalorder %v2339, 0
        %vm2372 = vcmp.ne.s32.totalorder %v2340, 0
        %vm2373 = vcmp.ne.s32.totalorder %v2341, 0
        %vm2374 = vcmp.ne.s32.totalorder %v2342, 0
        %vm2375 = vcmp.ne.s32.totalorder %v2343, 0
        %vm2376 = vcmp.ne.s32.totalorder %v2344, 0
        %vm2377 = vcmp.ne.s32.totalorder %v2345, 0
        %vm2378 = vcmp.ne.s32.totalorder %v2346, 0
        %vm2379 = vcmp.ne.s32.totalorder %v2347, 0
        %vm2380 = vcmp.ne.s32.totalorder %v2348, 0
        %vm2381 = vcmp.ne.s32.totalorder %v2349, 0
        %vm2382 = vcmp.ne.s32.totalorder %v2350, 0
        %vm2383 = vcmp.ne.s32.totalorder %v2351, 0
        %vm2384 = vcmp.ne.s32.totalorder %v2352, 0
        %vm2385 = vcmp.ne.s32.totalorder %v2353, 0
        %vm2386 = vcmp.ne.s32.totalorder %v2354, 0
        %vm2387 = vcmp.ne.s32.totalorder %v2355, 0
        %vm2388 = vcmp.ne.s32.totalorder %v2356, 0
        %vm2389 = vcmp.ne.s32.totalorder %v2357, 0
        %vm2390 = vcmp.ne.s32.totalorder %v2358, 0
        %vm2391 = vcmp.ne.s32.totalorder %v2359, 0
        %vm2392 = vcmp.ne.s32.totalorder %v2360, 0
        %vm2393 = vcmp.ne.s32.totalorder %v2361, 0
        %vm2394 = vcmp.ne.s32.totalorder %v2362, 0
        %vm2395 = vcmp.ne.s32.totalorder %v2363, 0
        %v2396 = vsel %vm2204, %v2108, %v1852
        %v2397 = vsel %vm2205, %v2109, %v1853
        %v2398 = vsel %vm2206, %v2110, %v1854
        %v2399 = vsel %vm2207, %v2111, %v1855
        %v2400 = vsel %vm2208, %v2112, %v1856
        %v2401 = vsel %vm2209, %v2113, %v1857
        %v2402 = vsel %vm2210, %v2114, %v1858
        %v2403 = vsel %vm2211, %v2115, %v1859
        %v2404 = vsel %vm2212, %v2116, %v1860
        %v2405 = vsel %vm2213, %v2117, %v1861
        %v2406 = vsel %vm2214, %v2118, %v1862
        %v2407 = vsel %vm2215, %v2119, %v1863
        %v2408 = vsel %vm2216, %v2120, %v1864
        %v2409 = vsel %vm2217, %v2121, %v1865
        %v2410 = vsel %vm2218, %v2122, %v1866
        %v2411 = vsel %vm2219, %v2123, %v1867
        %v2412 = vsel %vm2220, %v2124, %v1868
        %v2413 = vsel %vm2221, %v2125, %v1869
        %v2414 = vsel %vm2222, %v2126, %v1870
        %v2415 = vsel %vm2223, %v2127, %v1871
        %v2416 = vsel %vm2224, %v2128, %v1872
        %v2417 = vsel %vm2225, %v2129, %v1873
        %v2418 = vsel %vm2226, %v2130, %v1874
        %v2419 = vsel %vm2227, %v2131, %v1875
        %v2420 = vsel %vm2228, %v2132, %v1876
        %v2421 = vsel %vm2229, %v2133, %v1877
        %v2422 = vsel %vm2230, %v2134, %v1878
        %v2423 = vsel %vm2231, %v2135, %v1879
        %v2424 = vsel %vm2232, %v2136, %v1880
        %v2425 = vsel %vm2233, %v2137, %v1881
        %v2426 = vsel %vm2234, %v2138, %v1882
        %v2427 = vsel %vm2235, %v2139, %v1883
        %v2428 = vsel %vm2204, %v1852, %v2108
        %v2429 = vsel %vm2205, %v1853, %v2109
        %v2430 = vsel %vm2206, %v1854, %v2110
        %v2431 = vsel %vm2207, %v1855, %v2111
        %v2432 = vsel %vm2208, %v1856, %v2112
        %v2433 = vsel %vm2209, %v1857, %v2113
        %v2434 = vsel %vm2210, %v1858, %v2114
        %v2435 = vsel %vm2211, %v1859, %v2115
        %v2436 = vsel %vm2212, %v1860, %v2116
        %v2437 = vsel %vm2213, %v1861, %v2117
        %v2438 = vsel %vm2214, %v1862, %v2118
        %v2439 = vsel %vm2215, %v1863, %v2119
        %v2440 = vsel %vm2216, %v1864, %v2120
        %v2441 = vsel %vm2217, %v1865, %v2121
        %v2442 = vsel %vm2218, %v1866, %v2122
        %v2443 = vsel %vm2219, %v1867, %v2123
        %v2444 = vsel %vm2220, %v1868, %v2124
        %v2445 = vsel %vm2221, %v1869, %v2125
        %v2446 = vsel %vm2222, %v1870, %v2126
        %v2447 = vsel %vm2223, %v1871, %v2127
        %v2448 = vsel %vm2224, %v1872, %v2128
        %v2449 = vsel %vm2225, %v1873, %v2129
        %v2450 = vsel %vm2226, %v1874, %v2130
        %v2451 = vsel %vm2227, %v1875, %v2131
        %v2452 = vsel %vm2228, %v1876, %v2132
        %v2453 = vsel %vm2229, %v1877, %v2133
        %v2454 = vsel %vm2230, %v1878, %v2134
        %v2455 = vsel %vm2231, %v1879, %v2135
        %v2456 = vsel %vm2232, %v1880, %v2136
        %v2457 = vsel %vm2233, %v1881, %v2137
        %v2458 = vsel %vm2234, %v1882, %v2138
        %v2459 = vsel %vm2235, %v1883, %v2139
        %v2460 = vsub.f32 0.0, %v2396
        %v2461 = vsub.f32 0.0, %v2397
        %v2462 = vsub.f32 0.0, %v2398
        %v2463 = vsub.f32 0.0, %v2399
        %v2464 = vsub.f32 0.0, %v2400
        %v2465 = vsub.f32 0.0, %v2401
        %v2466 = vsub.f32 0.0, %v2402
        %v2467 = vsub.f32 0.0, %v2403
        %v2468 = vsub.f32 0.0, %v2404
        %v2469 = vsub.f32 0.0, %v2405
        %v2470 = vsub.f32 0.0, %v2406
        %v2471 = vsub.f32 0.0, %v2407
        %v2472 = vsub.f32 0.0, %v2408
        %v2473 = vsub.f32 0.0, %v2409
        %v2474 = vsub.f32 0.0, %v2410
        %v2475 = vsub.f32 0.0, %v2411
        %v2476 = vsub.f32 0.0, %v2412
        %v2477 = vsub.f32 0.0, %v2413
        %v2478 = vsub.f32 0.0, %v2414
        %v2479 = vsub.f32 0.0, %v2415
        %v2480 = vsub.f32 0.0, %v2416
        %v2481 = vsub.f32 0.0, %v2417
        %v2482 = vsub.f32 0.0, %v2418
        %v2483 = vsub.f32 0.0, %v2419
        %v2484 = vsub.f32 0.0, %v2420
        %v2485 = vsub.f32 0.0, %v2421
        %v2486 = vsub.f32 0.0, %v2422
        %v2487 = vsub.f32 0.0, %v2423
        %v2488 = vsub.f32 0.0, %v2424
        %v2489 = vsub.f32 0.0, %v2425
        %v2490 = vsub.f32 0.0, %v2426
        %v2491 = vsub.f32 0.0, %v2427
        %v2492 = vsel %vm2268, %v2460, %v2396
        %v2493 = vsel %vm2269, %v2461, %v2397
        %v2494 = vsel %vm2270, %v2462, %v2398
        %v2495 = vsel %vm2271, %v2463, %v2399
        %v2496 = vsel %vm2272, %v2464, %v2400
        %v2497 = vsel %vm2273, %v2465, %v2401
        %v2498 = vsel %vm2274, %v2466, %v2402
        %v2499 = vsel %vm2275, %v2467, %v2403
        %v2500 = vsel %vm2276, %v2468, %v2404
        %v2501 = vsel %vm2277, %v2469, %v2405
        %v2502 = vsel %vm2278, %v2470, %v2406
        %v2503 = vsel %vm2279, %v2471, %v2407
        %v2504 = vsel %vm2280, %v2472, %v2408
        %v2505 = vsel %vm2281, %v2473, %v2409
        %v2506 = vsel %vm2282, %v2474, %v2410
        %v2507 = vsel %vm2283, %v2475, %v2411
        %v2508 = vsel %vm2284, %v2476, %v2412
        %v2509 = vsel %vm2285, %v2477, %v2413
        %v2510 = vsel %vm2286, %v2478, %v2414
        %v2511 = vsel %vm2287, %v2479, %v2415
        %v2512 = vsel %vm2288, %v2480, %v2416
        %v2513 = vsel %vm2289, %v2481, %v2417
        %v2514 = vsel %vm2290, %v2482, %v2418
        %v2515 = vsel %vm2291, %v2483, %v2419
        %v2516 = vsel %vm2292, %v2484, %v2420
        %v2517 = vsel %vm2293, %v2485, %v2421
        %v2518 = vsel %vm2294, %v2486, %v2422
        %v2519 = vsel %vm2295, %v2487, %v2423
        %v2520 = vsel %vm2296, %v2488, %v2424
        %v2521 = vsel %vm2297, %v2489, %v2425
        %v2522 = vsel %vm2298, %v2490, %v2426
        %v2523 = vsel %vm2299, %v2491, %v2427
        %v2524 = vsub.f32 0.0, %v2428
        %v2525 = vsub.f32 0.0, %v2429
        %v2526 = vsub.f32 0.0, %v2430
        %v2527 = vsub.f32 0.0, %v2431
        %v2528 = vsub.f32 0.0, %v2432
        %v2529 = vsub.f32 0.0, %v2433
        %v2530 = vsub.f32 0.0, %v2434
        %v2531 = vsub.f32 0.0, %v2435
        %v2532 = vsub.f32 0.0, %v2436
        %v2533 = vsub.f32 0.0, %v2437
        %v2534 = vsub.f32 0.0, %v2438
        %v2535 = vsub.f32 0.0, %v2439
        %v2536 = vsub.f32 0.0, %v2440
        %v2537 = vsub.f32 0.0, %v2441
        %v2538 = vsub.f32 0.0, %v2442
        %v2539 = vsub.f32 0.0, %v2443
        %v2540 = vsub.f32 0.0, %v2444
        %v2541 = vsub.f32 0.0, %v2445
        %v2542 = vsub.f32 0.0, %v2446
        %v2543 = vsub.f32 0.0, %v2447
        %v2544 = vsub.f32 0.0, %v2448
        %v2545 = vsub.f32 0.0, %v2449
        %v2546 = vsub.f32 0.0, %v2450
        %v2547 = vsub.f32 0.0, %v2451
        %v2548 = vsub.f32 0.0, %v2452
        %v2549 = vsub.f32 0.0, %v2453
        %v2550 = vsub.f32 0.0, %v2454
        %v2551 = vsub.f32 0.0, %v2455
        %v2552 = vsub.f32 0.0, %v2456
        %v2553 = vsub.f32 0.0, %v2457
        %v2554 = vsub.f32 0.0, %v2458
        %v2555 = vsub.f32 0.0, %v2459
        %v2556 = vsel %vm2364, %v2524, %v2428
        %v2557 = vsel %vm2365, %v2525, %v2429
        %v2558 = vsel %vm2366, %v2526, %v2430
        %v2559 = vsel %vm2367, %v2527, %v2431
        %v2560 = vsel %vm2368, %v2528, %v2432
        %v2561 = vsel %vm2369, %v2529, %v2433
        %v2562 = vsel %vm2370, %v2530, %v2434
        %v2563 = vsel %vm2371, %v2531, %v2435
        %v2564 = vsel %vm2372, %v2532, %v2436
        %v2565 = vsel %vm2373, %v2533, %v2437
        %v2566 = vsel %vm2374, %v2534, %v2438
        %v2567 = vsel %vm2375, %v2535, %v2439
        %v2568 = vsel %vm2376, %v2536, %v2440
        %v2569 = vsel %vm2377, %v2537, %v2441
        %v2570 = vsel %vm2378, %v2538, %v2442
        %v2571 = vsel %vm2379, %v2539, %v2443
        %v2572 = vsel %vm2380, %v2540, %v2444
        %v2573 = vsel %vm2381, %v2541, %v2445
        %v2574 = vsel %vm2382, %v2542, %v2446
        %v2575 = vsel %vm2383, %v2543, %v2447
        %v2576 = vsel %vm2384, %v2544, %v2448
        %v2577 = vsel %vm2385, %v2545, %v2449
        %v2578 = vsel %vm2386, %v2546, %v2450
        %v2579 = vsel %vm2387, %v2547, %v2451
        %v2580 = vsel %vm2388, %v2548, %v2452
        %v2581 = vsel %vm2389, %v2549, %v2453
        %v2582 = vsel %vm2390, %v2550, %v2454
        %v2583 = vsel %vm2391, %v2551, %v2455
        %v2584 = vsel %vm2392, %v2552, %v2456
        %v2585 = vsel %vm2393, %v2553, %v2457
        %v2586 = vsel %vm2394, %v2554, %v2458
        %v2587 = vsel %vm2395, %v2555, %v2459
        %2588 = vst [vmem:[%s192] sm:$0xff] %v2492
        %2589 = vst [vmem:[%s192 + $0x8] sm:$0xff] %v2493
        %2590 = vst [vmem:[%s192 + $0x10] sm:$0xff] %v2494
        %2591 = vst [vmem:[%s192 + $0x18] sm:$0xff] %v2495
        %2592 = vst [vmem:[%s192 + $0x20] sm:$0xff] %v2496
        %2593 = vst [vmem:[%s192 + $0x28] sm:$0xff] %v2497
        %2594 = vst [vmem:[%s192 + $0x30] sm:$0xff] %v2498
        %2595 = vst [vmem:[%s192 + $0x38] sm:$0xff] %v2499
        %2596 = vst [vmem:[%s192 + $0x40] sm:$0xff] %v2500
        %2597 = vst [vmem:[%s192 + $0x48] sm:$0xff] %v2501
        %2598 = vst [vmem:[%s192 + $0x50] sm:$0xff] %v2502
        %2599 = vst [vmem:[%s192 + $0x58] sm:$0xff] %v2503
        %2600 = vst [vmem:[%s192 + $0x60] sm:$0xff] %v2504
        %2601 = vst [vmem:[%s192 + $0x68] sm:$0xff] %v2505
        %2602 = vst [vmem:[%s192 + $0x70] sm:$0xff] %v2506
        %2603 = vst [vmem:[%s192 + $0x78] sm:$0xff] %v2507
        %2604 = vst [vmem:[%s192 + $0x80] sm:$0xff] %v2508
        %2605 = vst [vmem:[%s192 + $0x88] sm:$0xff] %v2509
        %2606 = vst [vmem:[%s192 + $0x90] sm:$0xff] %v2510
        %2607 = vst [vmem:[%s192 + $0x98] sm:$0xff] %v2511
        %2608 = vst [vmem:[%s192 + $0xa0] sm:$0xff] %v2512
        %2609 = vst [vmem:[%s192 + $0xa8] sm:$0xff] %v2513
        %2610 = vst [vmem:[%s192 + $0xb0] sm:$0xff] %v2514
        %2611 = vst [vmem:[%s192 + $0xb8] sm:$0xff] %v2515
        %2612 = vst [vmem:[%s192 + $0xc0] sm:$0xff] %v2516
        %2613 = vst [vmem:[%s192 + $0xc8] sm:$0xff] %v2517
        %2614 = vst [vmem:[%s192 + $0xd0] sm:$0xff] %v2518
        %2615 = vst [vmem:[%s192 + $0xd8] sm:$0xff] %v2519
        %2616 = vst [vmem:[%s192 + $0xe0] sm:$0xff] %v2520
        %2617 = vst [vmem:[%s192 + $0xe8] sm:$0xff] %v2521
        %2618 = vst [vmem:[%s192 + $0xf0] sm:$0xff] %v2522
        %2619 = vst [vmem:[%s192 + $0xf8] sm:$0xff] %v2523
        %2620 = vst [vmem:[%s192 + $0x100] sm:$0xff] %v2556
        %2621 = vst [vmem:[%s192 + $0x108] sm:$0xff] %v2557
        %2622 = vst [vmem:[%s192 + $0x110] sm:$0xff] %v2558
        %2623 = vst [vmem:[%s192 + $0x118] sm:$0xff] %v2559
        %2624 = vst [vmem:[%s192 + $0x120] sm:$0xff] %v2560
        %2625 = vst [vmem:[%s192 + $0x128] sm:$0xff] %v2561
        %2626 = vst [vmem:[%s192 + $0x130] sm:$0xff] %v2562
        %2627 = vst [vmem:[%s192 + $0x138] sm:$0xff] %v2563
        %2628 = vst [vmem:[%s192 + $0x140] sm:$0xff] %v2564
        %2629 = vst [vmem:[%s192 + $0x148] sm:$0xff] %v2565
        %2630 = vst [vmem:[%s192 + $0x150] sm:$0xff] %v2566
        %2631 = vst [vmem:[%s192 + $0x158] sm:$0xff] %v2567
        %2632 = vst [vmem:[%s192 + $0x160] sm:$0xff] %v2568
        %2633 = vst [vmem:[%s192 + $0x168] sm:$0xff] %v2569
        %2634 = vst [vmem:[%s192 + $0x170] sm:$0xff] %v2570
        %2635 = vst [vmem:[%s192 + $0x178] sm:$0xff] %v2571
        %2636 = vst [vmem:[%s192 + $0x180] sm:$0xff] %v2572
        %2637 = vst [vmem:[%s192 + $0x188] sm:$0xff] %v2573
        %2638 = vst [vmem:[%s192 + $0x190] sm:$0xff] %v2574
        %2639 = vst [vmem:[%s192 + $0x198] sm:$0xff] %v2575
        %2640 = vst [vmem:[%s192 + $0x1a0] sm:$0xff] %v2576
        %2641 = vst [vmem:[%s192 + $0x1a8] sm:$0xff] %v2577
        %2642 = vst [vmem:[%s192 + $0x1b0] sm:$0xff] %v2578
        %2643 = vst [vmem:[%s192 + $0x1b8] sm:$0xff] %v2579
        %2644 = vst [vmem:[%s192 + $0x1c0] sm:$0xff] %v2580
        %2645 = vst [vmem:[%s192 + $0x1c8] sm:$0xff] %v2581
        %2646 = vst [vmem:[%s192 + $0x1d0] sm:$0xff] %v2582
        %2647 = vst [vmem:[%s192 + $0x1d8] sm:$0xff] %v2583
        %2648 = vst [vmem:[%s192 + $0x1e0] sm:$0xff] %v2584
        %2649 = vst [vmem:[%s192 + $0x1e8] sm:$0xff] %v2585
        %2650 = vst [vmem:[%s192 + $0x1f0] sm:$0xff] %v2586
        %2651 = vst [vmem:[%s192 + $0x1f8] sm:$0xff] %v2587
        %s2652 = sand.u32 %s91, 1
        %s2653 = scalar_lea.sflag [#allocation4], %s2652
        %s2654 = sand.u32 %s91, 1
        %s2655 = smul.addr %s2654, 512
        %s2656 = scalar_lea.vmem [#allocation7], %s2655
        // Predicated region
        $region37: #{tpu_custom_call.1} parent=27 // pred_check
          %p2657 = pneg %p101
        $region38: #{tpu_custom_call.1} parent=27 // pred_check_branch
          %2659 = sbr.rel (%p2657) target = $region40
        $region39: #{tpu_custom_call.1} parent=27 // pred_region
          %s2660 = smul.u32 2, %s25
          %s2662 = ssub.s32 8192, 8192
          %2663 = vsyncadd %s2653, %s2662
          %s2664 = smul.addr %s24, 64
          %s2665 = sadd.s32 %s2660, %s2664
          %s2666 = smul.addr %s2665, 128
          %s2667 = scalar_lea.hbm %s2, %s2666
          %s2668 = sshll.u32 %s2656, 4
          %s2669 = int_to_ptr.vmem [resolvable:$true] %s2668
          %2674 = dma.vmem_to_hbm [thread:$0]  %s2669, 8192, %s2667, %s2653, 256, 256, 16
        $region40: #{tpu_custom_call.1} parent=27 // pred_fallthru
          _
      $region28: #{tpu_custom_call.1} parent=5 // pred_fallthru
        _
      %p2675 = scmp.le.s32.totalorder 2, %s15
      // Predicated region
      $region41: #{tpu_custom_call.1} parent=5 // pred_check
        %p2676 = pneg %p2675
      $region42: #{tpu_custom_call.1} parent=5 // pred_check_branch
        %2678 = sbr.rel (%p2676) target = $region44
      $region43: #{tpu_custom_call.1} parent=5 // pred_region
        %s2679 = ssub.s32 %s15, 2
        // Predicated region
        $region45: #{tpu_custom_call.1} parent=43 // pred_check
          %p2680 = pneg %p107
        $region46: #{tpu_custom_call.1} parent=43 // pred_check_branch
          %2682 = sbr.rel (%p2680) target = $region48
        $region47: #{tpu_custom_call.1} parent=43 // pred_region
          %s2683 = sand.u32 %s92, 1
          %s2684 = scalar_lea.sflag [#allocation4], %s2683
          %s2685 = sand.u32 %s92, 1
          %s2686 = smul.addr %s2685, 512
          %s2687 = scalar_lea.vmem [#allocation7], %s2686
          %2688 = dma.done %s2684, 8192
        $region48: #{tpu_custom_call.1} parent=43 // pred_fallthru
          _
      $region44: #{tpu_custom_call.1} parent=5 // pred_fallthru
        _
    $region6: #{tpu_custom_call.1} parent=1 // loop_footer
      %s19 = sadd.s32 1, %s15
    $region7: #{tpu_custom_call.1} parent=1 // loop_footer_branch
      %14 = sbr.rel target = $region3
    $region8: #{tpu_custom_call.1} parent=1 // loop_exit
      _
    %2689 = vsyncpa [#allocation3], 1
    %s2690 = scalar_lea.sflag [#allocation3], 1
    %2691 = vsyncpa %s2690, 1
    %2692 = vsyncpa [#allocation6], 1
    %2693 = vsyncpa [#allocation4], 1
    %s2694 = scalar_lea.sflag [#allocation4], 1
    %2695 = vsyncpa %s2694, 1

</llo_original>
